<compile_context>
chip_gen: v7x
topology: tpu7x:2x2x1
jax: 0.10.0
libtpu: 0.0.40
codegen_flags: <defaults>
</compile_context>

<pallas_src>
from functools import partial

import jax
import jax.numpy as jnp
from jax import lax
from jax.experimental import pallas as pl
from jax.experimental.pallas import tpu as pltpu


# --------------------------------------------------------------------------
# Pallas kernel: direct 3x3 / stride-2 conv + bias + ReLU
# --------------------------------------------------------------------------
def _conv_taps_kernel(x_ref, w_ref, b_ref, o_ref, acc_ref, *, kh, kw, hq, wq):
    """kh*kw tap matmuls with an explicit f32 VMEM accumulator.

    x_ref  : (1, 4*hq*wq, cin)   bf16  flattened stride-2 parity planes
    w_ref  : (kh*kw, cin, tile_n) bf16  one (cin, tile_n) slab per tap
    b_ref  : (1, tile_n)          f32
    o_ref  : (1, m_out, tile_n)   bf16  m_out = (ho-1)*wq + wo
    acc_ref: (m_out, tile_n)      f32   VMEM scratch

    Every tap's LHS is a contiguous row window of the flattened slab (no
    reshape, no relayout).  Accumulator rows with column index >= wo are
    harmless garbage and are discarded by the wrapper.
    """
    m_out = acc_ref.shape[0]
    tap = 0
    for di in range(kh):
        for dj in range(kw):
            p = 2 * (di % 2) + (dj % 2)              # parity plane index
            s = (p * hq + di // 2) * wq + dj // 2    # static row-window start
            contrib = jnp.dot(
                x_ref[0, s:s + m_out, :], w_ref[di * kw + dj],
                preferred_element_type=jnp.float32)
            if tap == 0:
                acc_ref[...] = contrib               # no zero-fill needed
            else:
                acc_ref[...] += contrib
            tap += 1
    # Fused epilogue: bias + ReLU + bf16 cast, lane-dense store.
    o_ref[0] = jnp.maximum(acc_ref[...] + b_ref[...], 0.0).astype(o_ref.dtype)


# --------------------------------------------------------------------------
# Wrapper: layout plumbing only
# --------------------------------------------------------------------------
def _pick_tile_n(cout_pad):
    # Prefer MXU-friendly 512/256 tiles (v6e/v7x 256-wide MXU); fall back to 128.
    for cand in (512, 256, 128):
        if cout_pad % cand == 0:
            return cand
    return 128


def _vmem_limit_bytes():
    try:
        cap = pltpu.get_tpu_info().vmem_capacity_bytes
        return min(int(cap * 0.8), 112 * 1024 * 1024)
    except Exception:
        return 48 * 1024 * 1024  # safe default on v5e / v6e / v7x


def conv2d_relu_pallas(x_nchw, w_oihw, bias, *, stride=2, pad=1):
    assert stride == 2, "parity (space-to-depth) repack assumes stride 2"
    B, Cin, H, W = x_nchw.shape
    Cout, _, kh, kw = w_oihw.shape
    Ho = (H + 2 * pad - kh) // stride + 1
    Wo = (W + 2 * pad - kw) // stride + 1

    # NHWC + bf16 once (API-boundary transpose), zero-pad, round padded extents
    # up to even so the parity split is exact (extra row/col is never used).
    x = jnp.transpose(x_nchw, (0, 2, 3, 1)).astype(jnp.bfloat16)
    Hp, Wp = H + 2 * pad, W + 2 * pad
    xp = jnp.pad(x, ((0, 0), (pad, pad + Hp % 2), (pad, pad + Wp % 2), (0, 0)))
    Hq, Wq = (Hp + Hp % 2) // 2, (Wp + Wp % 2) // 2

    # Parity planes p = 2*rp + cp stacked along rows, then flattened:
    # (B, 4*Hq*Wq, Cin).  One input-sized HBM pass.
    planes = [xp[:, rp::2, cp::2, :] for rp in (0, 1) for cp in (0, 1)]
    xflat = jnp.concatenate(planes, axis=1).reshape(B, 4 * Hq * Wq, Cin)

    m_out = (Ho - 1) * Wq + Wo
    for di in range(kh):
        for dj in range(kw):
            p = 2 * (di % 2) + (dj % 2)
            s = (p * Hq + di // 2) * Wq + dj // 2
            assert s + m_out <= 4 * Hq * Wq, "tap window out of bounds"

    # Per-tap weights: (kh*kw, Cin, Cout) -> pad Cout to a 128 multiple, bf16.
    cout_pad = ((Cout + 127) // 128) * 128
    tile_n = _pick_tile_n(cout_pad)
    w_taps = jnp.transpose(w_oihw, (2, 3, 1, 0)).reshape(kh * kw, Cin, Cout)
    w_taps = jnp.pad(w_taps, ((0, 0), (0, 0), (0, cout_pad - Cout)))
    w_taps = w_taps.astype(jnp.bfloat16)
    b_pad = jnp.pad(bias, (0, cout_pad - Cout)).reshape(1, cout_pad)
    b_pad = b_pad.astype(jnp.float32)

    # Grid: (Cout tiles, batch), both "parallel".  Weight tile index depends only
    # on the outer axis -> resident across the inner batch loop; input block is
    # re-streamed per batch element.
    out = pl.pallas_call(
        partial(_conv_taps_kernel, kh=kh, kw=kw, hq=Hq, wq=Wq),
        out_shape=jax.ShapeDtypeStruct((B, m_out, cout_pad), jnp.bfloat16),
        grid=(cout_pad // tile_n, B),
        in_specs=[
            pl.BlockSpec((1, 4 * Hq * Wq, Cin), lambda n, b: (b, 0, 0)),
            pl.BlockSpec((kh * kw, Cin, tile_n), lambda n, b: (0, 0, n)),
            pl.BlockSpec((1, tile_n), lambda n, b: (0, n)),
        ],
        out_specs=pl.BlockSpec((1, m_out, tile_n), lambda n, b: (b, 0, n)),
        scratch_shapes=[pltpu.VMEM((m_out, tile_n), jnp.float32)],
        compiler_params=pltpu.CompilerParams(
            dimension_semantics=("parallel", "parallel"),
            vmem_limit_bytes=_vmem_limit_bytes()),
    )(xflat, w_taps, b_pad)
    # TODO(synk): for very large feature maps additionally tile the spatial (M)
    # dimension; with this parity-flattened layout that requires a per-plane
    # tiling scheme, omitted at these sizes.

    # Drop garbage wrap-around columns and Cout lane padding; NCHW only at the
    # PyTorch-layout API boundary (fused with this slice by XLA).
    out = jnp.pad(out, ((0, 0), (0, Ho * Wq - m_out), (0, 0)))
    feat = out.reshape(B, Ho, Wq, cout_pad)[:, :, :Wo, :Cout]
    return jnp.transpose(feat, (0, 3, 1, 2))  # bf16, NCHW


def mask_nearest_resize(mask_bool, out_hw):
    """F.interpolate(mask[None].float(), size=out_hw).to(bool)[0] semantics.

    PyTorch mode='nearest' picks src = floor(dst * in / out) -> pure integer
    gather; kept in plain JAX (a Pallas kernel here would be ~all lane padding
    for W far below 128 lanes).
    """
    _, H, W = mask_bool.shape
    Ho, Wo = out_hw
    rows = (jnp.arange(Ho) * H) // Ho
    cols = (jnp.arange(Wo) * W) // Wo
    return mask_bool[:, rows][:, :, cols]


# --------------------------------------------------------------------------
# BackboneBase equivalent
# --------------------------------------------------------------------------
class BackboneBasePallas:
    """Mirrors BackboneBase.forward: {'0': (features, resized_mask)}.

    return_interm_layers=False -> single output level '0'.  The torchvision
    backbone is replaced by a synthetic 3x3/stride-2 conv+ReLU ("layer4"
    surrogate) whose hot path runs in the Pallas kernel above.
    """
    # TODO(synk): requires_grad_ / layer freezing and IntermediateLayerGetter
    # (pretrained ResNet) are training/bookkeeping concerns with no
    # forward-pass Pallas equivalent.

    def __init__(self, num_channels: int, in_channels: int, key):
        self.num_channels = num_channels
        kw_, kb_ = jax.random.split(key)
        self.weight = (jax.random.normal(
            kw_, (num_channels, in_channels, 3, 3), jnp.float32) * 0.1)
        self.bias = (jax.random.normal(kb_, (num_channels,), jnp.float32)
                     * 0.01)

    def forward(self, tensors_nchw, mask_bhw):
        feat = conv2d_relu_pallas(tensors_nchw, self.weight, self.bias)
        xs = {"0": feat}
        out = {}
        for name, x in xs.items():
            m = mask_nearest_resize(mask_bhw, x.shape[-2:])
            out[name] = (x, m)          # NestedTensor(x, mask)
        return out


# --------------------------------------------------------------------------
# Main
# --------------------------------------------------------------------------
if __name__ == "__main__":
    key = jax.random.PRNGKey(0)
    k_x, k_p = jax.random.split(key)

    B, C, H, W = 2, 4, 16, 16
    num_channels = 32

    x = jax.random.normal(k_x, (B, C, H, W), jnp.float32)
    # padding mask: True where padded (image b=1 has only 12 valid columns)
    valid_w = jnp.array([16, 12])
    mask = jnp.arange(W)[None, None, :] >= valid_w[:, None, None]
    mask = jnp.broadcast_to(mask, (B, H, W))

    model = BackboneBasePallas(num_channels, C, k_p)
    out = model.forward(x, mask)
    feat, mask_out = out["0"]
    jax.block_until_ready(feat)
    jax.block_until_ready(mask_out)

    # ---- correctness checks ----
    # Reference uses the same bf16 operand quantization with f32 math,
    # matching the kernel's bf16-into-MXU / f32-accumulate numerics; the
    # kernel additionally stores bf16, hence the tolerance.
    xq = x.astype(jnp.bfloat16).astype(jnp.float32)
    wq = model.weight.astype(jnp.bfloat16).astype(jnp.float32)
    ref_feat = lax.conv_general_dilated(
        xq, wq, window_strides=(2, 2), padding=((1, 1), (1, 1)),
        dimension_numbers=("NCHW", "OIHW", "NCHW"))
    ref_feat = jnp.maximum(ref_feat + model.bias[None, :, None, None], 0.0)
    assert feat.shape == (B, num_channels, H // 2, W // 2)
    assert jnp.allclose(feat.astype(jnp.float32), ref_feat,
                        atol=2e-2, rtol=2e-2)

    rows = (jnp.arange(H // 2) * H) // (H // 2)
    cols = (jnp.arange(W // 2) * W) // (W // 2)
    ref_mask = mask[:, rows][:, :, cols]
    assert mask_out.shape == (B, H // 2, W // 2) and mask_out.dtype == jnp.bool_
    assert bool(jnp.all(mask_out == ref_mask))

    print("KERNEL_OK")
</pallas_src>

<mosaic_0001>
module attributes {stable_mosaic.version = 11 : i64} {
  func.func @_conv_taps_kernel(%arg0: i32, %arg1: i32, %arg2: memref<1x324x4xbf16, #tpu.memory_space<vmem>>, %arg3: memref<9x4x128xbf16, #tpu.memory_space<vmem>>, %arg4: memref<1x128xf32, #tpu.memory_space<vmem>>, %arg5: memref<1x71x128xbf16, #tpu.memory_space<vmem>>, %arg6: memref<71x128xf32, #tpu.memory_space<vmem>>) attributes {dimension_semantics = [#tpu.dimension_semantics<parallel>, #tpu.dimension_semantics<parallel>], iteration_bounds = array<i64: 1, 2>, scalar_prefetch = 0 : i64, scratch_operands = 1 : i64, tpu.core_type = #tpu.core_type<tc>, window_params = [{transform_indices = @transform_0, window_bounds = array<i64: 1, 324, 4>}, {transform_indices = @transform_1, window_bounds = array<i64: 9, 4, 128>}, {transform_indices = @transform_2, window_bounds = array<i64: 1, 128>}, {transform_indices = @transform_3, window_bounds = array<i64: 1, 71, 128>}]} {
    %c0 = arith.constant 0 : index
    %c0_0 = arith.constant 0 : index
    %c0_1 = arith.constant 0 : index
    %0 = vector.load %arg2[%c0, %c0_0, %c0_1] : memref<1x324x4xbf16, #tpu.memory_space<vmem>>, vector<1x71x4xbf16>
    %1 = vector.shape_cast %0 : vector<1x71x4xbf16> to vector<71x4xbf16>
    %c0_2 = arith.constant 0 : index
    %c0_3 = arith.constant 0 : index
    %c0_4 = arith.constant 0 : index
    %2 = vector.load %arg3[%c0_2, %c0_3, %c0_4] : memref<9x4x128xbf16, #tpu.memory_space<vmem>>, vector<1x4x128xbf16>
    %3 = vector.shape_cast %2 : vector<1x4x128xbf16> to vector<4x128xbf16>
    %cst = arith.constant dense<0.000000e+00> : vector<71x128xf32>
    %4 = tpu.matmul %1, %3, %cst {dimension_numbers = #tpu.dot_dimension_numbers<[1], [0], [0], [1], [0, 0, 1, 1], [], []>} : vector<71x4xbf16>, vector<4x128xbf16>, vector<71x128xf32> -> vector<71x128xf32>
    %c0_5 = arith.constant 0 : index
    %c0_6 = arith.constant 0 : index
    %5 = vector.load %arg6[%c0_5, %c0_6] : memref<71x128xf32, #tpu.memory_space<vmem>>, vector<71x128xf32>
    tpu.vector_store %arg6[%c0_5, %c0_6], %4 {strides = array<i32>} : memref<71x128xf32, #tpu.memory_space<vmem>>, vector<71x128xf32>,
    %c0_7 = arith.constant 0 : index
    %c81 = arith.constant 81 : index
    %c0_8 = arith.constant 0 : index
    %6 = vector.load %arg2[%c0_7, %c81, %c0_8] : memref<1x324x4xbf16, #tpu.memory_space<vmem>>, vector<1x71x4xbf16>
    %7 = vector.shape_cast %6 : vector<1x71x4xbf16> to vector<71x4xbf16>
    %c1 = arith.constant 1 : index
    %c0_9 = arith.constant 0 : index
    %c0_10 = arith.constant 0 : index
    %8 = vector.load %arg3[%c1, %c0_9, %c0_10] : memref<9x4x128xbf16, #tpu.memory_space<vmem>>, vector<1x4x128xbf16>
    %9 = vector.shape_cast %8 : vector<1x4x128xbf16> to vector<4x128xbf16>
    %cst_11 = arith.constant dense<0.000000e+00> : vector<71x128xf32>
    %10 = tpu.matmul %7, %9, %cst_11 {dimension_numbers = #tpu.dot_dimension_numbers<[1], [0], [0], [1], [0, 0, 1, 1], [], []>} : vector<71x4xbf16>, vector<4x128xbf16>, vector<71x128xf32> -> vector<71x128xf32>
    %c0_12 = arith.constant 0 : index
    %c0_13 = arith.constant 0 : index
    %11 = vector.load %arg6[%c0_12, %c0_13] : memref<71x128xf32, #tpu.memory_space<vmem>>, vector<71x128xf32>
    %12 = arith.addf %11, %10 : vector<71x128xf32>
    %c0_14 = arith.constant 0 : index
    %c0_15 = arith.constant 0 : index
    %13 = vector.load %arg6[%c0_14, %c0_15] : memref<71x128xf32, #tpu.memory_space<vmem>>, vector<71x128xf32>
    tpu.vector_store %arg6[%c0_14, %c0_15], %12 {strides = array<i32>} : memref<71x128xf32, #tpu.memory_space<vmem>>, vector<71x128xf32>,
    %c0_16 = arith.constant 0 : index
    %c1_17 = arith.constant 1 : index
    %c0_18 = arith.constant 0 : index
    %14 = vector.load %arg2[%c0_16, %c1_17, %c0_18] : memref<1x324x4xbf16, #tpu.memory_space<vmem>>, vector<1x71x4xbf16>
    %15 = vector.shape_cast %14 : vector<1x71x4xbf16> to vector<71x4xbf16>
    %c2 = arith.constant 2 : index
    %c0_19 = arith.constant 0 : index
    %c0_20 = arith.constant 0 : index
    %16 = vector.load %arg3[%c2, %c0_19, %c0_20] : memref<9x4x128xbf16, #tpu.memory_space<vmem>>, vector<1x4x128xbf16>
    %17 = vector.shape_cast %16 : vector<1x4x128xbf16> to vector<4x128xbf16>
    %cst_21 = arith.constant dense<0.000000e+00> : vector<71x128xf32>
    %18 = tpu.matmul %15, %17, %cst_21 {dimension_numbers = #tpu.dot_dimension_numbers<[1], [0], [0], [1], [0, 0, 1, 1], [], []>} : vector<71x4xbf16>, vector<4x128xbf16>, vector<71x128xf32> -> vector<71x128xf32>
    %c0_22 = arith.constant 0 : index
    %c0_23 = arith.constant 0 : index
    %19 = vector.load %arg6[%c0_22, %c0_23] : memref<71x128xf32, #tpu.memory_space<vmem>>, vector<71x128xf32>
    %20 = arith.addf %19, %18 : vector<71x128xf32>
    %c0_24 = arith.constant 0 : index
    %c0_25 = arith.constant 0 : index
    %21 = vector.load %arg6[%c0_24, %c0_25] : memref<71x128xf32, #tpu.memory_space<vmem>>, vector<71x128xf32>
    tpu.vector_store %arg6[%c0_24, %c0_25], %20 {strides = array<i32>} : memref<71x128xf32, #tpu.memory_space<vmem>>, vector<71x128xf32>,
    %c0_26 = arith.constant 0 : index
    %c162 = arith.constant 162 : index
    %c0_27 = arith.constant 0 : index
    %22 = vector.load %arg2[%c0_26, %c162, %c0_27] : memref<1x324x4xbf16, #tpu.memory_space<vmem>>, vector<1x71x4xbf16>
    %23 = vector.shape_cast %22 : vector<1x71x4xbf16> to vector<71x4xbf16>
    %c3 = arith.constant 3 : index
    %c0_28 = arith.constant 0 : index
    %c0_29 = arith.constant 0 : index
    %24 = vector.load %arg3[%c3, %c0_28, %c0_29] : memref<9x4x128xbf16, #tpu.memory_space<vmem>>, vector<1x4x128xbf16>
    %25 = vector.shape_cast %24 : vector<1x4x128xbf16> to vector<4x128xbf16>
    %cst_30 = arith.constant dense<0.000000e+00> : vector<71x128xf32>
    %26 = tpu.matmul %23, %25, %cst_30 {dimension_numbers = #tpu.dot_dimension_numbers<[1], [0], [0], [1], [0, 0, 1, 1], [], []>} : vector<71x4xbf16>, vector<4x128xbf16>, vector<71x128xf32> -> vector<71x128xf32>
    %c0_31 = arith.constant 0 : index
    %c0_32 = arith.constant 0 : index
    %27 = vector.load %arg6[%c0_31, %c0_32] : memref<71x128xf32, #tpu.memory_space<vmem>>, vector<71x128xf32>
    %28 = arith.addf %27, %26 : vector<71x128xf32>
    %c0_33 = arith.constant 0 : index
    %c0_34 = arith.constant 0 : index
    %29 = vector.load %arg6[%c0_33, %c0_34] : memref<71x128xf32, #tpu.memory_space<vmem>>, vector<71x128xf32>
    tpu.vector_store %arg6[%c0_33, %c0_34], %28 {strides = array<i32>} : memref<71x128xf32, #tpu.memory_space<vmem>>, vector<71x128xf32>,
    %c0_35 = arith.constant 0 : index
    %c243 = arith.constant 243 : index
    %c0_36 = arith.constant 0 : index
    %30 = vector.load %arg2[%c0_35, %c243, %c0_36] : memref<1x324x4xbf16, #tpu.memory_space<vmem>>, vector<1x71x4xbf16>
    %31 = vector.shape_cast %30 : vector<1x71x4xbf16> to vector<71x4xbf16>
    %c4 = arith.constant 4 : index
    %c0_37 = arith.constant 0 : index
    %c0_38 = arith.constant 0 : index
    %32 = vector.load %arg3[%c4, %c0_37, %c0_38] : memref<9x4x128xbf16, #tpu.memory_space<vmem>>, vector<1x4x128xbf16>
    %33 = vector.shape_cast %32 : vector<1x4x128xbf16> to vector<4x128xbf16>
    %cst_39 = arith.constant dense<0.000000e+00> : vector<71x128xf32>
    %34 = tpu.matmul %31, %33, %cst_39 {dimension_numbers = #tpu.dot_dimension_numbers<[1], [0], [0], [1], [0, 0, 1, 1], [], []>} : vector<71x4xbf16>, vector<4x128xbf16>, vector<71x128xf32> -> vector<71x128xf32>
    %c0_40 = arith.constant 0 : index
    %c0_41 = arith.constant 0 : index
    %35 = vector.load %arg6[%c0_40, %c0_41] : memref<71x128xf32, #tpu.memory_space<vmem>>, vector<71x128xf32>
    %36 = arith.addf %35, %34 : vector<71x128xf32>
    %c0_42 = arith.constant 0 : index
    %c0_43 = arith.constant 0 : index
    %37 = vector.load %arg6[%c0_42, %c0_43] : memref<71x128xf32, #tpu.memory_space<vmem>>, vector<71x128xf32>
    tpu.vector_store %arg6[%c0_42, %c0_43], %36 {strides = array<i32>} : memref<71x128xf32, #tpu.memory_space<vmem>>, vector<71x128xf32>,
    %c0_44 = arith.constant 0 : index
    %c163 = arith.constant 163 : index
    %c0_45 = arith.constant 0 : index
    %38 = vector.load %arg2[%c0_44, %c163, %c0_45] : memref<1x324x4xbf16, #tpu.memory_space<vmem>>, vector<1x71x4xbf16>
    %39 = vector.shape_cast %38 : vector<1x71x4xbf16> to vector<71x4xbf16>
    %c5 = arith.constant 5 : index
    %c0_46 = arith.constant 0 : index
    %c0_47 = arith.constant 0 : index
    %40 = vector.load %arg3[%c5, %c0_46, %c0_47] : memref<9x4x128xbf16, #tpu.memory_space<vmem>>, vector<1x4x128xbf16>
    %41 = vector.shape_cast %40 : vector<1x4x128xbf16> to vector<4x128xbf16>
    %cst_48 = arith.constant dense<0.000000e+00> : vector<71x128xf32>
    %42 = tpu.matmul %39, %41, %cst_48 {dimension_numbers = #tpu.dot_dimension_numbers<[1], [0], [0], [1], [0, 0, 1, 1], [], []>} : vector<71x4xbf16>, vector<4x128xbf16>, vector<71x128xf32> -> vector<71x128xf32>
    %c0_49 = arith.constant 0 : index
    %c0_50 = arith.constant 0 : index
    %43 = vector.load %arg6[%c0_49, %c0_50] : memref<71x128xf32, #tpu.memory_space<vmem>>, vector<71x128xf32>
    %44 = arith.addf %43, %42 : vector<71x128xf32>
    %c0_51 = arith.constant 0 : index
    %c0_52 = arith.constant 0 : index
    %45 = vector.load %arg6[%c0_51, %c0_52] : memref<71x128xf32, #tpu.memory_space<vmem>>, vector<71x128xf32>
    tpu.vector_store %arg6[%c0_51, %c0_52], %44 {strides = array<i32>} : memref<71x128xf32, #tpu.memory_space<vmem>>, vector<71x128xf32>,
    %c0_53 = arith.constant 0 : index
    %c9 = arith.constant 9 : index
    %c0_54 = arith.constant 0 : index
    %46 = vector.load %arg2[%c0_53, %c9, %c0_54] : memref<1x324x4xbf16, #tpu.memory_space<vmem>>, vector<1x71x4xbf16>
    %47 = vector.shape_cast %46 : vector<1x71x4xbf16> to vector<71x4xbf16>
    %c6 = arith.constant 6 : index
    %c0_55 = arith.constant 0 : index
    %c0_56 = arith.constant 0 : index
    %48 = vector.load %arg3[%c6, %c0_55, %c0_56] : memref<9x4x128xbf16, #tpu.memory_space<vmem>>, vector<1x4x128xbf16>
    %49 = vector.shape_cast %48 : vector<1x4x128xbf16> to vector<4x128xbf16>
    %cst_57 = arith.constant dense<0.000000e+00> : vector<71x128xf32>
    %50 = tpu.matmul %47, %49, %cst_57 {dimension_numbers = #tpu.dot_dimension_numbers<[1], [0], [0], [1], [0, 0, 1, 1], [], []>} : vector<71x4xbf16>, vector<4x128xbf16>, vector<71x128xf32> -> vector<71x128xf32>
    %c0_58 = arith.constant 0 : index
    %c0_59 = arith.constant 0 : index
    %51 = vector.load %arg6[%c0_58, %c0_59] : memref<71x128xf32, #tpu.memory_space<vmem>>, vector<71x128xf32>
    %52 = arith.addf %51, %50 : vector<71x128xf32>
    %c0_60 = arith.constant 0 : index
    %c0_61 = arith.constant 0 : index
    %53 = vector.load %arg6[%c0_60, %c0_61] : memref<71x128xf32, #tpu.memory_space<vmem>>, vector<71x128xf32>
    tpu.vector_store %arg6[%c0_60, %c0_61], %52 {strides = array<i32>} : memref<71x128xf32, #tpu.memory_space<vmem>>, vector<71x128xf32>,
    %c0_62 = arith.constant 0 : index
    %c90 = arith.constant 90 : index
    %c0_63 = arith.constant 0 : index
    %54 = vector.load %arg2[%c0_62, %c90, %c0_63] : memref<1x324x4xbf16, #tpu.memory_space<vmem>>, vector<1x71x4xbf16>
    %55 = vector.shape_cast %54 : vector<1x71x4xbf16> to vector<71x4xbf16>
    %c7 = arith.constant 7 : index
    %c0_64 = arith.constant 0 : index
    %c0_65 = arith.constant 0 : index
    %56 = vector.load %arg3[%c7, %c0_64, %c0_65] : memref<9x4x128xbf16, #tpu.memory_space<vmem>>, vector<1x4x128xbf16>
    %57 = vector.shape_cast %56 : vector<1x4x128xbf16> to vector<4x128xbf16>
    %cst_66 = arith.constant dense<0.000000e+00> : vector<71x128xf32>
    %58 = tpu.matmul %55, %57, %cst_66 {dimension_numbers = #tpu.dot_dimension_numbers<[1], [0], [0], [1], [0, 0, 1, 1], [], []>} : vector<71x4xbf16>, vector<4x128xbf16>, vector<71x128xf32> -> vector<71x128xf32>
    %c0_67 = arith.constant 0 : index
    %c0_68 = arith.constant 0 : index
    %59 = vector.load %arg6[%c0_67, %c0_68] : memref<71x128xf32, #tpu.memory_space<vmem>>, vector<71x128xf32>
    %60 = arith.addf %59, %58 : vector<71x128xf32>
    %c0_69 = arith.constant 0 : index
    %c0_70 = arith.constant 0 : index
    %61 = vector.load %arg6[%c0_69, %c0_70] : memref<71x128xf32, #tpu.memory_space<vmem>>, vector<71x128xf32>
    tpu.vector_store %arg6[%c0_69, %c0_70], %60 {strides = array<i32>} : memref<71x128xf32, #tpu.memory_space<vmem>>, vector<71x128xf32>,
    %c0_71 = arith.constant 0 : index
    %c10 = arith.constant 10 : index
    %c0_72 = arith.constant 0 : index
    %62 = vector.load %arg2[%c0_71, %c10, %c0_72] : memref<1x324x4xbf16, #tpu.memory_space<vmem>>, vector<1x71x4xbf16>
    %63 = vector.shape_cast %62 : vector<1x71x4xbf16> to vector<71x4xbf16>
    %c8 = arith.constant 8 : index
    %c0_73 = arith.constant 0 : index
    %c0_74 = arith.constant 0 : index
    %64 = vector.load %arg3[%c8, %c0_73, %c0_74] : memref<9x4x128xbf16, #tpu.memory_space<vmem>>, vector<1x4x128xbf16>
    %65 = vector.shape_cast %64 : vector<1x4x128xbf16> to vector<4x128xbf16>
    %cst_75 = arith.constant dense<0.000000e+00> : vector<71x128xf32>
    %66 = tpu.matmul %63, %65, %cst_75 {dimension_numbers = #tpu.dot_dimension_numbers<[1], [0], [0], [1], [0, 0, 1, 1], [], []>} : vector<71x4xbf16>, vector<4x128xbf16>, vector<71x128xf32> -> vector<71x128xf32>
    %c0_76 = arith.constant 0 : index
    %c0_77 = arith.constant 0 : index
    %67 = vector.load %arg6[%c0_76, %c0_77] : memref<71x128xf32, #tpu.memory_space<vmem>>, vector<71x128xf32>
    %68 = arith.addf %67, %66 : vector<71x128xf32>
    %c0_78 = arith.constant 0 : index
    %c0_79 = arith.constant 0 : index
    %69 = vector.load %arg6[%c0_78, %c0_79] : memref<71x128xf32, #tpu.memory_space<vmem>>, vector<71x128xf32>
    tpu.vector_store %arg6[%c0_78, %c0_79], %68 {strides = array<i32>} : memref<71x128xf32, #tpu.memory_space<vmem>>, vector<71x128xf32>,
    %c0_80 = arith.constant 0 : index
    %c0_81 = arith.constant 0 : index
    %70 = vector.load %arg6[%c0_80, %c0_81] : memref<71x128xf32, #tpu.memory_space<vmem>>, vector<71x128xf32>
    %c0_82 = arith.constant 0 : index
    %c0_83 = arith.constant 0 : index
    %71 = vector.load %arg4[%c0_82, %c0_83] : memref<1x128xf32, #tpu.memory_space<vmem>>, vector<1x128xf32>
    %72 = vector.broadcast %71 : vector<1x128xf32> to vector<71x128xf32>
    %73 = arith.addf %70, %72 : vector<71x128xf32>
    %cst_84 = arith.constant 0.000000e+00 : f32
    %74 = vector.broadcast %cst_84 : f32 to vector<71x128xf32>
    %75 = arith.maximumf %73, %74 : vector<71x128xf32>
    %76 = arith.truncf %75 : vector<71x128xf32> to vector<71x128xbf16>
    %c0_85 = arith.constant 0 : index
    %c0_86 = arith.constant 0 : index
    %c0_87 = arith.constant 0 : index
    %77 = vector.load %arg5[%c0_85, %c0_86, %c0_87] : memref<1x71x128xbf16, #tpu.memory_space<vmem>>, vector<1x71x128xbf16>
    %78 = vector.shape_cast %77 : vector<1x71x128xbf16> to vector<71x128xbf16>
    %79 = vector.shape_cast %76 : vector<71x128xbf16> to vector<1x71x128xbf16>
    tpu.vector_store %arg5[%c0_85, %c0_86, %c0_87], %79 {strides = array<i32>} : memref<1x71x128xbf16, #tpu.memory_space<vmem>>, vector<1x71x128xbf16>,
    return
  }
  func.func @transform_0(%arg0: i32, %arg1: i32) -> (i32, i32, i32) {
    %c0_i32 = arith.constant 0 : i32
    %c0_i32_0 = arith.constant 0 : i32
    %c0_i32_1 = arith.constant 0 : i32
    return %arg1, %c0_i32, %c0_i32_0 : i32, i32, i32
  }
  func.func @transform_1(%arg0: i32, %arg1: i32) -> (i32, i32, i32) {
    %c0_i32 = arith.constant 0 : i32
    %c0_i32_0 = arith.constant 0 : i32
    %c0_i32_1 = arith.constant 0 : i32
    return %c0_i32, %c0_i32_0, %arg0 : i32, i32, i32
  }
  func.func @transform_2(%arg0: i32, %arg1: i32) -> (i32, i32) {
    %c0_i32 = arith.constant 0 : i32
    %c0_i32_0 = arith.constant 0 : i32
    return %c0_i32, %arg0 : i32, i32
  }
  func.func @transform_3(%arg0: i32, %arg1: i32) -> (i32, i32, i32) {
    %c0_i32 = arith.constant 0 : i32
    %c0_i32_0 = arith.constant 0 : i32
    return %arg1, %c0_i32, %arg0 : i32, i32, i32
  }
}

</mosaic_0001>

<llo_original>
// kernel: tpu_custom_call.1
$region0: #{tpu_custom_call.1}
  #allocation0 [shape = 'u32[]', space=smem, size = 0x4, offset = 0x4, fixed_abs, tag = 'smem constant byte address 0x4 - core index']
  #allocation1 [shape = 'u32[144,128]{1,0:T(1,128)}', space=vmem, size = 0x12000, scoped, tag = 'internal scratch']
  #allocation2 [shape = 'f32[71,128]{1,0:T(8,128)}', space=vmem, size = 0x9000, scoped, tag = 'scratch operand']
  %s0 = inlined_call_operand.vmem [shape: bf16[2,324,4], index: 0, kind: input, shape index: {}]
  %s1 = inlined_call_operand.vmem [shape: bf16[9,4,128], index: 1, kind: input, shape index: {}]
  %s2 = inlined_call_operand.vmem [shape: f32[1,128], index: 2, kind: input, shape index: {}]
  %s3 = inlined_call_operand.vmem [shape: bf16[2,71,128], index: 3, kind: output, shape index: {}]
  %s4 = sld [smem:[#allocation0]]
  $region45: #{tpu_custom_call.1} parent=0
    _
  %s6 = ssub.s32 1, %s4
  %s7 = scalar_select 0, %s6, %s4
  loop: start=0, step=1, limit=4
  $region2: #{tpu_custom_call.1} parent=0 // loop_pre_header
    _
  $region3: #{tpu_custom_call.1} parent=0 // loop_header
    %s9 = sphi 0, %s13
    %p10 = scmp.ge.s32.totalorder %s9, 4
    %s16 = sphi 0, %s28
    %s17 = sphi 0, %s24
    %s18 = sphi 0, %s16
    %s19 = sphi 0, %s17
    %s20 = sphi 0, %s18
    %s21 = sphi 0, %s19
    %s31 = sphi 0, %s33
    %s34 = sphi 0, %s31
    %s35 = sphi 0, %s34
    %s51 = sphi 0, %s35
    %s57 = sphi 0, %s59
    %s60 = sphi 0, %s57
    %s61 = sphi 0, %s60
    %s77 = sphi 0, %s61
    %s83 = sphi 0, %s85
    %s86 = sphi 0, %s83
    %s87 = sphi 0, %s86
    %s103 = sphi 0, %s87
    %s111 = sphi 0, %s113
    %s114 = sphi 0, %s111
    %s115 = sphi 0, %s114
    %s131 = sphi 0, %s115
  $region4: #{tpu_custom_call.1} parent=0 // loop_header_branch
    %12 = sbr.rel (%p10) target = $region8
  $region5: #{tpu_custom_call.1} parent=0 // loop_body
    %s14 = ssub.s32 %s9, 1
    %s15 = ssub.s32 %s9, 2
    %s22 = sadd.s32 1, %s17
    %p23 = scmp.ge.s32.totalorder %s22, 2
    %s24 = scalar_select %p23, 0, %s22
    %s25 = sadd.s32 1, %s16
    %s26 = scalar_select %p23, %s25, %s16
    %p27 = scmp.ge.s32.totalorder %s26, 1
    %s28 = scalar_select %p27, 0, %s26
    %s29 = ssub.s32 %s17, %s24
    %p30 = scmp.eq.s32.totalorder %s29, 0
    %s32 = sadd.s32 %s31, 1
    %s33 = scalar_select %p30, %s31, %s32
    %p36 = pneg %p30
    %p37 = scmp.eq.s32.totalorder %s9, 1
    %p38 = por %p36, %p37
    %p39 = scmp.ne.s32.totalorder %s31, %s34
    %p40 = scmp.eq.s32.totalorder %s9, 0
    %p41 = por %p39, %p40
    %p42 = scmp.ne.s32.totalorder %s31, %s34
    %p43 = scmp.eq.s32.totalorder %s14, 1
    %p44 = por %p42, %p43
    %p45 = scmp.ne.s32.totalorder %s34, %s35
    %p46 = scmp.eq.s32.totalorder %s14, 0
    %p47 = por %p45, %p46
    %p48 = scmp.ne.s32.totalorder %s34, %s35
    %p49 = scmp.eq.s32.totalorder %s15, 1
    %p50 = por %p48, %p49
    %p52 = scmp.ne.s32.totalorder %s35, %s51
    %p53 = scmp.eq.s32.totalorder %s15, 0
    %p54 = por %p52, %p53
    %s55 = ssub.s32 %s16, %s28
    %p56 = scmp.eq.s32.totalorder %s55, 0
    %s58 = sadd.s32 %s57, 1
    %s59 = scalar_select %p56, %s57, %s58
    %p62 = pneg %p56
    %p63 = scmp.eq.s32.totalorder %s9, 1
    %p64 = por %p62, %p63
    %p65 = scmp.ne.s32.totalorder %s57, %s60
    %p66 = scmp.eq.s32.totalorder %s9, 0
    %p67 = por %p65, %p66
    %p68 = scmp.ne.s32.totalorder %s57, %s60
    %p69 = scmp.eq.s32.totalorder %s14, 1
    %p70 = por %p68, %p69
    %p71 = scmp.ne.s32.totalorder %s60, %s61
    %p72 = scmp.eq.s32.totalorder %s14, 0
    %p73 = por %p71, %p72
    %p74 = scmp.ne.s32.totalorder %s60, %s61
    %p75 = scmp.eq.s32.totalorder %s15, 1
    %p76 = por %p74, %p75
    %p78 = scmp.ne.s32.totalorder %s61, %s77
    %p79 = scmp.eq.s32.totalorder %s15, 0
    %p80 = por %p78, %p79
    %s81 = ssub.s32 %s16, %s28
    %p82 = scmp.eq.s32.totalorder %s81, 0
    %s84 = sadd.s32 %s83, 1
    %s85 = scalar_select %p82, %s83, %s84
    %p88 = pneg %p82
    %p89 = scmp.eq.s32.totalorder %s9, 1
    %p90 = por %p88, %p89
    %p91 = scmp.ne.s32.totalorder %s83, %s86
    %p92 = scmp.eq.s32.totalorder %s9, 0
    %p93 = por %p91, %p92
    %p94 = scmp.ne.s32.totalorder %s83, %s86
    %p95 = scmp.eq.s32.totalorder %s14, 1
    %p96 = por %p94, %p95
    %p97 = scmp.ne.s32.totalorder %s86, %s87
    %p98 = scmp.eq.s32.totalorder %s14, 0
    %p99 = por %p97, %p98
    %p100 = scmp.ne.s32.totalorder %s86, %s87
    %p101 = scmp.eq.s32.totalorder %s15, 1
    %p102 = por %p100, %p101
    %p104 = scmp.ne.s32.totalorder %s87, %s103
    %p105 = scmp.eq.s32.totalorder %s15, 0
    %p106 = por %p104, %p105
    %s107 = ssub.s32 %s17, %s24
    %s108 = ssub.s32 %s16, %s28
    %s109 = sor.u32 %s107, %s108
    %p110 = scmp.eq.s32.totalorder %s109, 0
    %s112 = sadd.s32 %s111, 1
    %s113 = scalar_select %p110, %s111, %s112
    %p116 = pneg %p110
    %p117 = scmp.eq.s32.totalorder %s9, 1
    %p118 = por %p116, %p117
    %p119 = scmp.ne.s32.totalorder %s111, %s114
    %p120 = scmp.eq.s32.totalorder %s9, 0
    %p121 = por %p119, %p120
    %p122 = scmp.ne.s32.totalorder %s111, %s114
    %p123 = scmp.eq.s32.totalorder %s14, 1
    %p124 = por %p122, %p123
    %p125 = scmp.ne.s32.totalorder %s114, %s115
    %p126 = scmp.eq.s32.totalorder %s14, 0
    %p127 = por %p125, %p126
    %p128 = scmp.ne.s32.totalorder %s114, %s115
    %p129 = scmp.eq.s32.totalorder %s15, 1
    %p130 = por %p128, %p129
    %p132 = scmp.ne.s32.totalorder %s115, %s131
    %p133 = scmp.eq.s32.totalorder %s15, 0
    %p134 = por %p132, %p133
    %p135 = scmp.le.s32.totalorder 1, %s9
    %p136 = scmp.lt.s32.totalorder %s9, 3
    %p137 = pnand %p135, %p136
    %p138 = pneg %p137
    // Predicated region
    $region9: #{tpu_custom_call.1} parent=5 // pred_check
      _
    $region10: #{tpu_custom_call.1} parent=5 // pred_check_branch
      %140 = sbr.rel (%p137) target = $region12
    $region11: #{tpu_custom_call.1} parent=5 // pred_region
      %s141 = ssub.s32 %s9, 1
      // Predicated region
      $region13: #{tpu_custom_call.1} parent=11 // pred_check
        %p142 = pneg %p73
      $region14: #{tpu_custom_call.1} parent=11 // pred_check_branch
        %144 = sbr.rel (%p142) target = $region16
      $region15: #{tpu_custom_call.1} parent=11 // pred_region
        %p145 = scmp.lt.s32.totalorder %s18, 0
        %s146 = scalar_select %p145, %s18, 0
        %s147 = smul.addr %s146, 2
        %s148 = scalar_lea.vmem %s1, %s147
      $region16: #{tpu_custom_call.1} parent=11 // pred_fallthru
        _
      // Predicated region
      $region17: #{tpu_custom_call.1} parent=11 // pred_check
        %p149 = pneg %p99
      $region18: #{tpu_custom_call.1} parent=11 // pred_check_branch
        %151 = sbr.rel (%p149) target = $region20
      $region19: #{tpu_custom_call.1} parent=11 // pred_region
        %p152 = scmp.lt.s32.totalorder %s18, 0
        %s153 = scalar_select %p152, %s18, 0
        %s154 = scalar_lea.vmem %s2, %s153
      $region20: #{tpu_custom_call.1} parent=11 // pred_fallthru
        _
    $region12: #{tpu_custom_call.1} parent=5 // pred_fallthru
      _
    %p155 = scmp.lt.s32.totalorder %s9, 2
    // Predicated region
    $region21: #{tpu_custom_call.1} parent=5 // pred_check
      %p156 = pneg %p155
    $region22: #{tpu_custom_call.1} parent=5 // pred_check_branch
      %158 = sbr.rel (%p156) target = $region24
    $region23: #{tpu_custom_call.1} parent=5 // pred_region
      // Predicated region
      $region25: #{tpu_custom_call.1} parent=23 // pred_check
        %p159 = pneg %p41
      $region26: #{tpu_custom_call.1} parent=23 // pred_check_branch
        %161 = sbr.rel (%p159) target = $region28
      $region27: #{tpu_custom_call.1} parent=23 // pred_region
        %p162 = scmp.lt.s32.totalorder %s17, 1
        %s163 = scalar_select %p162, %s17, 1
        %s164 = smul.addr %s163, 41
        %s165 = smul.addr %s164, 4
        %s166 = scalar_lea.vmem %s0, %s165
      $region28: #{tpu_custom_call.1} parent=23 // pred_fallthru
        _
    $region24: #{tpu_custom_call.1} parent=5 // pred_fallthru
      _
    %p167 = scmp.le.s32.totalorder 1, %s9
    %p168 = scmp.lt.s32.totalorder %s9, 3
    %p169 = pnand %p167, %p168
    %p170 = pneg %p169
    // Predicated region
    $region29: #{tpu_custom_call.1} parent=5 // pred_check
      _
    $region30: #{tpu_custom_call.1} parent=5 // pred_check_branch
      %172 = sbr.rel (%p169) target = $region32
    $region31: #{tpu_custom_call.1} parent=5 // pred_region
      %s173 = ssub.s32 %s9, 1
      %p174 = scmp.lt.s32.totalorder %s19, 1
      %s175 = scalar_select %p174, %s19, 1
      %s176 = smul.addr %s175, 41
      %s177 = smul.addr %s176, 4
      %s178 = scalar_lea.vmem %s0, %s177
      %p179 = pneg %p47
      %p180 = pneg %p44
      %p181 = scmp.lt.s32.totalorder %s18, 0
      %s182 = scalar_select %p181, %s18, 0
      %s183 = smul.addr %s182, 2
      %s184 = scalar_lea.vmem %s1, %s183
      %p185 = pneg %p73
      %p186 = pneg %p70
      %p187 = scmp.lt.s32.totalorder %s18, 0
      %s188 = scalar_select %p187, %s18, 0
      %s189 = scalar_lea.vmem %s2, %s188
      %p190 = pneg %p99
      %p191 = pneg %p96
      %p192 = pneg %p127
      %p193 = pneg %p124
      %p194 = scmp.lt.s32.totalorder %s19, 1
      %s195 = scalar_select %p194, %s19, 1
      %p196 = scmp.lt.s32.totalorder %s18, 0
      %s197 = scalar_select %p196, %s18, 0
      %s198 = smul.addr %s195, 9
      %s199 = sadd.s32 %s197, %s198
      %s200 = smul.addr %s199, 4
      %s201 = scalar_lea.vmem %s3, %s200
      %p202 = scmp.lt.s32.totalorder %s19, 1
      %s203 = scalar_select %p202, %s19, 1
      %s204 = smul.addr %s203, 41
      %s205 = smul.addr %s204, 4
      %s206 = scalar_lea.vmem %s0, %s205
      %p207 = scmp.lt.s32.totalorder %s18, 0
      %s208 = scalar_select %p207, %s18, 0
      %s209 = smul.addr %s208, 2
      %s210 = scalar_lea.vmem %s1, %s209
      %p211 = scmp.lt.s32.totalorder %s18, 0
      %s212 = scalar_select %p211, %s18, 0
      %s213 = scalar_lea.vmem %s2, %s212
      %p214 = scmp.lt.s32.totalorder %s19, 1
      %s215 = scalar_select %p214, %s19, 1
      %p216 = scmp.lt.s32.totalorder %s18, 0
      %s217 = scalar_select %p216, %s18, 0
      %s218 = smul.addr %s215, 9
      %s219 = sadd.s32 %s217, %s218
      %s220 = smul.addr %s219, 4
      %s221 = scalar_lea.vmem %s3, %s220
      %v223 = vld [vmem:[%s206] sm:$0xf]
      %v224 = vld [vmem:[%s206 + $0x4] sm:$0xf]
      %v225 = vld [vmem:[%s206 + $0x8] sm:$0xf]
      %v226 = vld [vmem:[%s206 + $0xc] sm:$0xf]
      %v227 = vld [vmem:[%s206 + $0x10] sm:$0xf]
      %v228 = vld [vmem:[%s206 + $0x14] sm:$0xf]
      %v229 = vld [vmem:[%s206 + $0x18] sm:$0xf]
      %v230 = vld [vmem:[%s206 + $0x1c] sm:$0xf]
      %v231 = vld [vmem:[%s206 + $0x20] sm:$0xf]
      %v232 = vld [vmem:[%s210] sm:$0x3]
      %v242 = vunpack.c.l.b16 %v223
      %v243 = vunpack.c.l.b16 %v224
      %v244 = vunpack.c.l.b16 %v225
      %v245 = vunpack.c.l.b16 %v226
      %v246 = vunpack.c.l.b16 %v227
      %v247 = vunpack.c.l.b16 %v228
      %v248 = vunpack.c.l.b16 %v229
      %v249 = vunpack.c.l.b16 %v230
      %v250 = vunpack.c.l.b16 %v231
      %v251 = vpack.c.b16 %v243, %v242
      %v252 = vpack.c.b16 %v245, %v244
      %v253 = vpack.c.b16 %v247, %v246
      %v254 = vpack.c.b16 %v249, %v248
      %v255 = vpack.c.b16 %v250, %v250
      %vm256 = vcmask 31744
      %v258 = vsel %vm256, %v251, 0
      %v261 = vsel %vm256, %v252, 0
      %v264 = vsel %vm256, %v253, 0
      %v267 = vsel %vm256, %v254, 0
      %v270 = vsel %vm256, %v255, 0
      %vm272 = vcmask 1041408
      %v274 = vsel %vm272, %v232, 0
      %276 = vmatprep.subr.bf16.mxu0 0
      %277 = vmatpush1.bf16.msra.mxu0 %v274
      %278 = vmatprep.subr.bf16.mxu0 0
      %279 = vmatpush1.bf16.msra.mxu0 0
      %280 = vmatprep.subr.bf16.mxu0 0
      %281 = vmatpush1.bf16.msra.mxu0 0
      %282 = vmatprep.subr.bf16.mxu0 0
      %283 = vmatpush1.bf16.msra.mxu0 0
      %284 = vmatprep.subr.bf16.mxu0 0
      %285 = vmatpush1.bf16.msra.mxu0 0
      %286 = vmatprep.subr.bf16.mxu0 0
      %287 = vmatpush1.bf16.msra.mxu0 0
      %288 = vmatprep.subr.bf16.mxu0 0
      %289 = vmatpush1.bf16.msra.mxu0 0
      %290 = vmatprep.subr.bf16.mxu0 0
      %291 = vmatpush1.bf16.msra.mxu0 0
      %292 = vmatprep.subr.bf16.mxu0 0
      %293 = vmatpush1.bf16.msra.mxu0 0
      %294 = vmatprep.subr.bf16.mxu0 0
      %295 = vmatpush1.bf16.msra.mxu0 0
      %296 = vmatprep.subr.bf16.mxu0 0
      %297 = vmatpush1.bf16.msra.mxu0 0
      %298 = vmatprep.subr.bf16.mxu0 0
      %299 = vmatpush1.bf16.msra.mxu0 0
      %300 = vmatprep.subr.bf16.mxu0 0
      %301 = vmatpush1.bf16.msra.mxu0 0
      %302 = vmatprep.subr.bf16.mxu0 0
      %303 = vmatpush1.bf16.msra.mxu0 0
      %304 = vmatprep.subr.bf16.mxu0 0
      %305 = vmatpush1.bf16.msra.mxu0 0
      %306 = vmatprep.subr.bf16.mxu0 0
      %307 = vmatpush1.bf16.msra.mxu0 0
      %308 = vmatprep.mubr.bf16.mxu0 0
      %309 = vmatmul.mubr.bf16.gmra.mrb[0].mxu0 %v258
      %v310 = vpop.f32.mrb[0].mxu0
      %v311 = vadd.f32 0.0, %v310
      %v312 = vpop.f32.mrb[0].mxu0
      %v313 = vpop.f32.mrb[0].mxu0
      %v314 = vadd.f32 0.0, %v313
      %v315 = vpop.f32.mrb[0].mxu0
      %316 = vmatprep.mubr.bf16.mxu0 0
      %317 = vmatmul.mubr.bf16.gmra.mrb[0].mxu0 %v261
      %v318 = vpop.f32.mrb[0].mxu0
      %v319 = vadd.f32 0.0, %v318
      %v320 = vpop.f32.mrb[0].mxu0
      %v321 = vpop.f32.mrb[0].mxu0
      %v322 = vadd.f32 0.0, %v321
      %v323 = vpop.f32.mrb[0].mxu0
      %324 = vmatprep.mubr.bf16.mxu0 0
      %325 = vmatmul.mubr.bf16.gmra.mrb[0].mxu0 %v264
      %v326 = vpop.f32.mrb[0].mxu0
      %v327 = vadd.f32 0.0, %v326
      %v328 = vpop.f32.mrb[0].mxu0
      %v329 = vpop.f32.mrb[0].mxu0
      %v330 = vadd.f32 0.0, %v329
      %v331 = vpop.f32.mrb[0].mxu0
      %332 = vmatprep.mubr.bf16.mxu0 0
      %333 = vmatmul.mubr.bf16.gmra.mrb[0].mxu0 %v267
      %v334 = vpop.f32.mrb[0].mxu0
      %v335 = vadd.f32 0.0, %v334
      %v336 = vpop.f32.mrb[0].mxu0
      %v337 = vpop.f32.mrb[0].mxu0
      %v338 = vadd.f32 0.0, %v337
      %v339 = vpop.f32.mrb[0].mxu0
      %340 = vmatprep.mubr.bf16.mxu0 0
      %341 = vmatmul.mubr.bf16.gmra.mrb[0].mxu0 %v270
      %v342 = vpop.f32.mrb[0].mxu0
      %v343 = vadd.f32 0.0, %v342
      %v344 = vpop.f32.mrb[0].mxu0
      %v345 = vpop.f32.mrb[0].mxu0
      %v346 = vpop.f32.mrb[0].mxu0
      %347 = vdwg.mxu0
      %348 = vst [vmem:[#allocation2] sm:$0xff] %v311
      %349 = vst [vmem:[#allocation2 + $0x8] sm:$0xff] %v314
      %350 = vst [vmem:[#allocation2 + $0x10] sm:$0xff] %v319
      %351 = vst [vmem:[#allocation2 + $0x18] sm:$0xff] %v322
      %352 = vst [vmem:[#allocation2 + $0x20] sm:$0xff] %v327
      %353 = vst [vmem:[#allocation2 + $0x28] sm:$0xff] %v330
      %354 = vst [vmem:[#allocation2 + $0x30] sm:$0xff] %v335
      %355 = vst [vmem:[#allocation2 + $0x38] sm:$0xff] %v338
      %356 = vst [vmem:[#allocation2 + $0x40] sm:$0x7f] %v343
      %v357 = vld [vmem:[%s206 + $0x28] sm:$0xf]
      %v358 = vld [vmem:[%s206 + $0x2c] sm:$0xf]
      %v359 = vld [vmem:[%s206 + $0x30] sm:$0xf]
      %v360 = vld [vmem:[%s206 + $0x34] sm:$0xf]
      %v361 = vld [vmem:[%s206 + $0x38] sm:$0xf]
      %v362 = vld [vmem:[%s206 + $0x3c] sm:$0xf]
      %v363 = vld [vmem:[%s206 + $0x40] sm:$0xf]
      %v364 = vld [vmem:[%s206 + $0x44] sm:$0xf]
      %v365 = vld [vmem:[%s206 + $0x48] sm:$0xf]
      %s366 = scalar_lea.vmem %s210, 2
      %v367 = vld [vmem:[%s366] sm:$0x3]
      %v377 = vunpack.c.l.b16 %v357
      %v378 = vunpack.c.l.b16 %v358
      %v379 = vunpack.c.l.b16 %v359
      %v380 = vunpack.c.l.b16 %v360
      %v381 = vunpack.c.l.b16 %v361
      %v382 = vunpack.c.l.b16 %v362
      %v383 = vunpack.c.l.b16 %v363
      %v384 = vunpack.c.l.b16 %v364
      %v385 = vunpack.c.l.b16 %v365
      %v386 = vpack.c.b16 %v378, %v377
      %v387 = vpack.c.b16 %v380, %v379
      %v388 = vpack.c.b16 %v382, %v381
      %v389 = vpack.c.b16 %v384, %v383
      %v390 = vpack.c.b16 %v385, %v385
      %vm391 = vsmask.f32 7424
      %v393 = vshrl.u32 %v386, 16
      %v395 = vshll.u32 %v386, 16
      %v397 = vrot.slane %v395, 1
      %v398 = vor.u32 %v393, %v397
      %v400 = vshll.u32 %v387, 16
      %v402 = vrot.slane %v400, 1
      %v403 = vsel %vm391, %v398, %v402
      %v404 = vshrl.u32 %v387, 16
      %v406 = vor.u32 %v404, %v402
      %v408 = vshll.u32 %v388, 16
      %v410 = vrot.slane %v408, 1
      %v411 = vsel %vm391, %v406, %v410
      %v412 = vshrl.u32 %v388, 16
      %v414 = vor.u32 %v412, %v410
      %v416 = vshll.u32 %v389, 16
      %v418 = vrot.slane %v416, 1
      %v419 = vsel %vm391, %v414, %v418
      %v420 = vshrl.u32 %v389, 16
      %v422 = vor.u32 %v420, %v418
      %v424 = vshll.u32 %v390, 16
      %v426 = vrot.slane %v424, 1
      %v427 = vsel %vm391, %v422, %v426
      %v428 = vshrl.u32 %v390, 16
      %v430 = vor.u32 %v428, %v426
      %v432 = vsel %vm256, %v403, 0
      %v435 = vsel %vm256, %v411, 0
      %v438 = vsel %vm256, %v419, 0
      %v441 = vsel %vm256, %v427, 0
      %v444 = vsel %vm256, %v430, 0
      %v447 = vsel %vm272, %v367, 0
      %449 = vmatprep.subr.bf16.mxu0 0
      %450 = vmatpush1.bf16.msra.mxu0 %v447
      %451 = vmatprep.subr.bf16.mxu0 0
      %452 = vmatpush1.bf16.msra.mxu0 0
      %453 = vmatprep.subr.bf16.mxu0 0
      %454 = vmatpush1.bf16.msra.mxu0 0
      %455 = vmatprep.subr.bf16.mxu0 0
      %456 = vmatpush1.bf16.msra.mxu0 0
      %457 = vmatprep.subr.bf16.mxu0 0
      %458 = vmatpush1.bf16.msra.mxu0 0
      %459 = vmatprep.subr.bf16.mxu0 0
      %460 = vmatpush1.bf16.msra.mxu0 0
      %461 = vmatprep.subr.bf16.mxu0 0
      %462 = vmatpush1.bf16.msra.mxu0 0
      %463 = vmatprep.subr.bf16.mxu0 0
      %464 = vmatpush1.bf16.msra.mxu0 0
      %465 = vmatprep.subr.bf16.mxu0 0
      %466 = vmatpush1.bf16.msra.mxu0 0
      %467 = vmatprep.subr.bf16.mxu0 0
      %468 = vmatpush1.bf16.msra.mxu0 0
      %469 = vmatprep.subr.bf16.mxu0 0
      %470 = vmatpush1.bf16.msra.mxu0 0
      %471 = vmatprep.subr.bf16.mxu0 0
      %472 = vmatpush1.bf16.msra.mxu0 0
      %473 = vmatprep.subr.bf16.mxu0 0
      %474 = vmatpush1.bf16.msra.mxu0 0
      %475 = vmatprep.subr.bf16.mxu0 0
      %476 = vmatpush1.bf16.msra.mxu0 0
      %477 = vmatprep.subr.bf16.mxu0 0
      %478 = vmatpush1.bf16.msra.mxu0 0
      %479 = vmatprep.subr.bf16.mxu0 0
      %480 = vmatpush1.bf16.msra.mxu0 0
      %481 = vmatprep.mubr.bf16.mxu0 0
      %482 = vmatmul.mubr.bf16.gmra.mrb[0].mxu0 %v432
      %v483 = vpop.f32.mrb[0].mxu0
      %v484 = vadd.f32 0.0, %v483
      %v485 = vpop.f32.mrb[0].mxu0
      %v486 = vpop.f32.mrb[0].mxu0
      %v487 = vadd.f32 0.0, %v486
      %v488 = vpop.f32.mrb[0].mxu0
      %489 = vmatprep.mubr.bf16.mxu0 0
      %490 = vmatmul.mubr.bf16.gmra.mrb[0].mxu0 %v435
      %v491 = vpop.f32.mrb[0].mxu0
      %v492 = vadd.f32 0.0, %v491
      %v493 = vpop.f32.mrb[0].mxu0
      %v494 = vpop.f32.mrb[0].mxu0
      %v495 = vadd.f32 0.0, %v494
      %v496 = vpop.f32.mrb[0].mxu0
      %497 = vmatprep.mubr.bf16.mxu0 0
      %498 = vmatmul.mubr.bf16.gmra.mrb[0].mxu0 %v438
      %v499 = vpop.f32.mrb[0].mxu0
      %v500 = vadd.f32 0.0, %v499
      %v501 = vpop.f32.mrb[0].mxu0
      %v502 = vpop.f32.mrb[0].mxu0
      %v503 = vadd.f32 0.0, %v502
      %v504 = vpop.f32.mrb[0].mxu0
      %505 = vmatprep.mubr.bf16.mxu0 0
      %506 = vmatmul.mubr.bf16.gmra.mrb[0].mxu0 %v441
      %v507 = vpop.f32.mrb[0].mxu0
      %v508 = vadd.f32 0.0, %v507
      %v509 = vpop.f32.mrb[0].mxu0
      %v510 = vpop.f32.mrb[0].mxu0
      %v511 = vadd.f32 0.0, %v510
      %v512 = vpop.f32.mrb[0].mxu0
      %513 = vmatprep.mubr.bf16.mxu0 0
      %514 = vmatmul.mubr.bf16.gmra.mrb[0].mxu0 %v444
      %v515 = vpop.f32.mrb[0].mxu0
      %v516 = vadd.f32 0.0, %v515
      %v517 = vpop.f32.mrb[0].mxu0
      %v518 = vpop.f32.mrb[0].mxu0
      %v519 = vpop.f32.mrb[0].mxu0
      %520 = vdwg.mxu0
      %v521 = vld [vmem:[#allocation2] sm:$0xff]
      %v522 = vld [vmem:[#allocation2 + $0x8] sm:$0xff]
      %v523 = vld [vmem:[#allocation2 + $0x10] sm:$0xff]
      %v524 = vld [vmem:[#allocation2 + $0x18] sm:$0xff]
      %v525 = vld [vmem:[#allocation2 + $0x20] sm:$0xff]
      %v526 = vld [vmem:[#allocation2 + $0x28] sm:$0xff]
      %v527 = vld [vmem:[#allocation2 + $0x30] sm:$0xff]
      %v528 = vld [vmem:[#allocation2 + $0x38] sm:$0xff]
      %v529 = vld [vmem:[#allocation2 + $0x40] sm:$0x7f]
      %v530 = vadd.f32 %v521, %v484
      %v531 = vadd.f32 %v522, %v487
      %v532 = vadd.f32 %v523, %v492
      %v533 = vadd.f32 %v524, %v495
      %v534 = vadd.f32 %v525, %v500
      %v535 = vadd.f32 %v526, %v503
      %v536 = vadd.f32 %v527, %v508
      %v537 = vadd.f32 %v528, %v511
      %v538 = vadd.f32 %v529, %v516
      %539 = vst [vmem:[#allocation2] sm:$0xff] %v530
      %540 = vst [vmem:[#allocation2 + $0x8] sm:$0xff] %v531
      %541 = vst [vmem:[#allocation2 + $0x10] sm:$0xff] %v532
      %542 = vst [vmem:[#allocation2 + $0x18] sm:$0xff] %v533
      %543 = vst [vmem:[#allocation2 + $0x20] sm:$0xff] %v534
      %544 = vst [vmem:[#allocation2 + $0x28] sm:$0xff] %v535
      %545 = vst [vmem:[#allocation2 + $0x30] sm:$0xff] %v536
      %546 = vst [vmem:[#allocation2 + $0x38] sm:$0xff] %v537
      %547 = vst [vmem:[#allocation2 + $0x40] sm:$0x7f] %v538
      %v548 = vld [vmem:[%s206] sm:$0xf]
      %v549 = vld [vmem:[%s206 + $0x4] sm:$0xf]
      %v550 = vld [vmem:[%s206 + $0x8] sm:$0xf]
      %v551 = vld [vmem:[%s206 + $0xc] sm:$0xf]
      %v552 = vld [vmem:[%s206 + $0x10] sm:$0xf]
      %v553 = vld [vmem:[%s206 + $0x14] sm:$0xf]
      %v554 = vld [vmem:[%s206 + $0x18] sm:$0xf]
      %v555 = vld [vmem:[%s206 + $0x1c] sm:$0xf]
      %v556 = vld [vmem:[%s206 + $0x20] sm:$0xf]
      %s557 = scalar_lea.vmem %s210, 4
      %v558 = vld [vmem:[%s557] sm:$0x3]
      %v568 = vunpack.c.l.b16 %v548
      %v569 = vunpack.c.l.b16 %v549
      %v570 = vunpack.c.l.b16 %v550
      %v571 = vunpack.c.l.b16 %v551
      %v572 = vunpack.c.l.b16 %v552
      %v573 = vunpack.c.l.b16 %v553
      %v574 = vunpack.c.l.b16 %v554
      %v575 = vunpack.c.l.b16 %v555
      %v576 = vunpack.c.l.b16 %v556
      %v577 = vpack.c.b16 %v569, %v568
      %v578 = vpack.c.b16 %v571, %v570
      %v579 = vpack.c.b16 %v573, %v572
      %v580 = vpack.c.b16 %v575, %v574
      %v581 = vpack.c.b16 %v576, %v576
      %v583 = vshrl.u32 %v577, 16
      %v585 = vshll.u32 %v577, 16
      %v587 = vrot.slane %v585, 1
      %v588 = vor.u32 %v583, %v587
      %v590 = vshll.u32 %v578, 16
      %v592 = vrot.slane %v590, 1
      %v593 = vsel %vm391, %v588, %v592
      %v594 = vshrl.u32 %v578, 16
      %v596 = vor.u32 %v594, %v592
      %v598 = vshll.u32 %v579, 16
      %v600 = vrot.slane %v598, 1
      %v601 = vsel %vm391, %v596, %v600
      %v602 = vshrl.u32 %v579, 16
      %v604 = vor.u32 %v602, %v600
      %v606 = vshll.u32 %v580, 16
      %v608 = vrot.slane %v606, 1
      %v609 = vsel %vm391, %v604, %v608
      %v610 = vshrl.u32 %v580, 16
      %v612 = vor.u32 %v610, %v608
      %v614 = vshll.u32 %v581, 16
      %v616 = vrot.slane %v614, 1
      %v617 = vsel %vm391, %v612, %v616
      %v618 = vshrl.u32 %v581, 16
      %v620 = vor.u32 %v618, %v616
      %v622 = vsel %vm256, %v593, 0
      %v625 = vsel %vm256, %v601, 0
      %v628 = vsel %vm256, %v609, 0
      %v631 = vsel %vm256, %v617, 0
      %v634 = vsel %vm256, %v620, 0
      %v637 = vsel %vm272, %v558, 0
      %639 = vmatprep.subr.bf16.mxu0 0
      %640 = vmatpush1.bf16.msra.mxu0 %v637
      %641 = vmatprep.subr.bf16.mxu0 0
      %642 = vmatpush1.bf16.msra.mxu0 0
      %643 = vmatprep.subr.bf16.mxu0 0
      %644 = vmatpush1.bf16.msra.mxu0 0
      %645 = vmatprep.subr.bf16.mxu0 0
      %646 = vmatpush1.bf16.msra.mxu0 0
      %647 = vmatprep.subr.bf16.mxu0 0
      %648 = vmatpush1.bf16.msra.mxu0 0
      %649 = vmatprep.subr.bf16.mxu0 0
      %650 = vmatpush1.bf16.msra.mxu0 0
      %651 = vmatprep.subr.bf16.mxu0 0
      %652 = vmatpush1.bf16.msra.mxu0 0
      %653 = vmatprep.subr.bf16.mxu0 0
      %654 = vmatpush1.bf16.msra.mxu0 0
      %655 = vmatprep.subr.bf16.mxu0 0
      %656 = vmatpush1.bf16.msra.mxu0 0
      %657 = vmatprep.subr.bf16.mxu0 0
      %658 = vmatpush1.bf16.msra.mxu0 0
      %659 = vmatprep.subr.bf16.mxu0 0
      %660 = vmatpush1.bf16.msra.mxu0 0
      %661 = vmatprep.subr.bf16.mxu0 0
      %662 = vmatpush1.bf16.msra.mxu0 0
      %663 = vmatprep.subr.bf16.mxu0 0
      %664 = vmatpush1.bf16.msra.mxu0 0
      %665 = vmatprep.subr.bf16.mxu0 0
      %666 = vmatpush1.bf16.msra.mxu0 0
      %667 = vmatprep.subr.bf16.mxu0 0
      %668 = vmatpush1.bf16.msra.mxu0 0
      %669 = vmatprep.subr.bf16.mxu0 0
      %670 = vmatpush1.bf16.msra.mxu0 0
      %671 = vmatprep.mubr.bf16.mxu0 0
      %672 = vmatmul.mubr.bf16.gmra.mrb[0].mxu0 %v622
      %v673 = vpop.f32.mrb[0].mxu0
      %v674 = vadd.f32 0.0, %v673
      %v675 = vpop.f32.mrb[0].mxu0
      %v676 = vpop.f32.mrb[0].mxu0
      %v677 = vadd.f32 0.0, %v676
      %v678 = vpop.f32.mrb[0].mxu0
      %679 = vmatprep.mubr.bf16.mxu0 0
      %680 = vmatmul.mubr.bf16.gmra.mrb[0].mxu0 %v625
      %v681 = vpop.f32.mrb[0].mxu0
      %v682 = vadd.f32 0.0, %v681
      %v683 = vpop.f32.mrb[0].mxu0
      %v684 = vpop.f32.mrb[0].mxu0
      %v685 = vadd.f32 0.0, %v684
      %v686 = vpop.f32.mrb[0].mxu0
      %687 = vmatprep.mubr.bf16.mxu0 0
      %688 = vmatmul.mubr.bf16.gmra.mrb[0].mxu0 %v628
      %v689 = vpop.f32.mrb[0].mxu0
      %v690 = vadd.f32 0.0, %v689
      %v691 = vpop.f32.mrb[0].mxu0
      %v692 = vpop.f32.mrb[0].mxu0
      %v693 = vadd.f32 0.0, %v692
      %v694 = vpop.f32.mrb[0].mxu0
      %695 = vmatprep.mubr.bf16.mxu0 0
      %696 = vmatmul.mubr.bf16.gmra.mrb[0].mxu0 %v631
      %v697 = vpop.f32.mrb[0].mxu0
      %v698 = vadd.f32 0.0, %v697
      %v699 = vpop.f32.mrb[0].mxu0
      %v700 = vpop.f32.mrb[0].mxu0
      %v701 = vadd.f32 0.0, %v700
      %v702 = vpop.f32.mrb[0].mxu0
      %703 = vmatprep.mubr.bf16.mxu0 0
      %704 = vmatmul.mubr.bf16.gmra.mrb[0].mxu0 %v634
      %v705 = vpop.f32.mrb[0].mxu0
      %v706 = vadd.f32 0.0, %v705
      %v707 = vpop.f32.mrb[0].mxu0
      %v708 = vpop.f32.mrb[0].mxu0
      %v709 = vpop.f32.mrb[0].mxu0
      %710 = vdwg.mxu0
      %v711 = vld [vmem:[#allocation2] sm:$0xff]
      %v712 = vld [vmem:[#allocation2 + $0x8] sm:$0xff]
      %v713 = vld [vmem:[#allocation2 + $0x10] sm:$0xff]
      %v714 = vld [vmem:[#allocation2 + $0x18] sm:$0xff]
      %v715 = vld [vmem:[#allocation2 + $0x20] sm:$0xff]
      %v716 = vld [vmem:[#allocation2 + $0x28] sm:$0xff]
      %v717 = vld [vmem:[#allocation2 + $0x30] sm:$0xff]
      %v718 = vld [vmem:[#allocation2 + $0x38] sm:$0xff]
      %v719 = vld [vmem:[#allocation2 + $0x40] sm:$0x7f]
      %v720 = vadd.f32 %v711, %v674
      %v721 = vadd.f32 %v712, %v677
      %v722 = vadd.f32 %v713, %v682
      %v723 = vadd.f32 %v714, %v685
      %v724 = vadd.f32 %v715, %v690
      %v725 = vadd.f32 %v716, %v693
      %v726 = vadd.f32 %v717, %v698
      %v727 = vadd.f32 %v718, %v701
      %v728 = vadd.f32 %v719, %v706
      %729 = vst [vmem:[#allocation2] sm:$0xff] %v720
      %730 = vst [vmem:[#allocation2 + $0x8] sm:$0xff] %v721
      %731 = vst [vmem:[#allocation2 + $0x10] sm:$0xff] %v722
      %732 = vst [vmem:[#allocation2 + $0x18] sm:$0xff] %v723
      %733 = vst [vmem:[#allocation2 + $0x20] sm:$0xff] %v724
      %734 = vst [vmem:[#allocation2 + $0x28] sm:$0xff] %v725
      %735 = vst [vmem:[#allocation2 + $0x30] sm:$0xff] %v726
      %736 = vst [vmem:[#allocation2 + $0x38] sm:$0xff] %v727
      %737 = vst [vmem:[#allocation2 + $0x40] sm:$0x7f] %v728
      %v738 = vld [vmem:[%s206 + $0x50] sm:$0xe]
      %v739 = vld [vmem:[%s206 + $0x54] sm:$0xf]
      %v740 = vld [vmem:[%s206 + $0x58] sm:$0xf]
      %v741 = vld [vmem:[%s206 + $0x5c] sm:$0xf]
      %v742 = vld [vmem:[%s206 + $0x60] sm:$0xf]
      %v743 = vld [vmem:[%s206 + $0x64] sm:$0xf]
      %v744 = vld [vmem:[%s206 + $0x68] sm:$0xf]
      %v745 = vld [vmem:[%s206 + $0x6c] sm:$0xf]
      %v746 = vld [vmem:[%s206 + $0x70] sm:$0xf]
      %v747 = vld [vmem:[%s206 + $0x74] sm:$0x1]
      %s748 = scalar_lea.vmem %s210, 6
      %v749 = vld [vmem:[%s748] sm:$0x3]
      %v760 = vunpack.c.l.b16 %v738
      %v761 = vunpack.c.l.b16 %v739
      %v762 = vunpack.c.l.b16 %v740
      %v763 = vunpack.c.l.b16 %v741
      %v764 = vunpack.c.l.b16 %v742
      %v765 = vunpack.c.l.b16 %v743
      %v766 = vunpack.c.l.b16 %v744
      %v767 = vunpack.c.l.b16 %v745
      %v768 = vunpack.c.l.b16 %v746
      %v769 = vunpack.c.l.b16 %v747
      %v770 = vpack.c.b16 %v761, %v760
      %v771 = vpack.c.b16 %v763, %v762
      %v772 = vpack.c.b16 %v765, %v764
      %v773 = vpack.c.b16 %v767, %v766
      %v774 = vpack.c.b16 %v769, %v768
      %vm775 = vcmask 1046528
      %v776 = vrot.slane %v770, 1
      %v777 = vrot.slane %v771, 1
      %v778 = vsel %vm775, %v776, %v777
      %v779 = vrot.slane %v772, 1
      %v780 = vsel %vm775, %v777, %v779
      %v781 = vrot.slane %v773, 1
      %v782 = vsel %vm775, %v779, %v781
      %v783 = vrot.slane %v774, 1
      %v784 = vsel %vm775, %v781, %v783
      %v786 = vsel %vm256, %v778, 0
      %v789 = vsel %vm256, %v780, 0
      %v792 = vsel %vm256, %v782, 0
      %v795 = vsel %vm256, %v784, 0
      %v798 = vsel %vm256, %v783, 0
      %v801 = vsel %vm272, %v749, 0
      %803 = vmatprep.subr.bf16.mxu0 0
      %804 = vmatpush1.bf16.msra.mxu0 %v801
      %805 = vmatprep.subr.bf16.mxu0 0
      %806 = vmatpush1.bf16.msra.mxu0 0
      %807 = vmatprep.subr.bf16.mxu0 0
      %808 = vmatpush1.bf16.msra.mxu0 0
      %809 = vmatprep.subr.bf16.mxu0 0
      %810 = vmatpush1.bf16.msra.mxu0 0
      %811 = vmatprep.subr.bf16.mxu0 0
      %812 = vmatpush1.bf16.msra.mxu0 0
      %813 = vmatprep.subr.bf16.mxu0 0
      %814 = vmatpush1.bf16.msra.mxu0 0
      %815 = vmatprep.subr.bf16.mxu0 0
      %816 = vmatpush1.bf16.msra.mxu0 0
      %817 = vmatprep.subr.bf16.mxu0 0
      %818 = vmatpush1.bf16.msra.mxu0 0
      %819 = vmatprep.subr.bf16.mxu0 0
      %820 = vmatpush1.bf16.msra.mxu0 0
      %821 = vmatprep.subr.bf16.mxu0 0
      %822 = vmatpush1.bf16.msra.mxu0 0
      %823 = vmatprep.subr.bf16.mxu0 0
      %824 = vmatpush1.bf16.msra.mxu0 0
      %825 = vmatprep.subr.bf16.mxu0 0
      %826 = vmatpush1.bf16.msra.mxu0 0
      %827 = vmatprep.subr.bf16.mxu0 0
      %828 = vmatpush1.bf16.msra.mxu0 0
      %829 = vmatprep.subr.bf16.mxu0 0
      %830 = vmatpush1.bf16.msra.mxu0 0
      %831 = vmatprep.subr.bf16.mxu0 0
      %832 = vmatpush1.bf16.msra.mxu0 0
      %833 = vmatprep.subr.bf16.mxu0 0
      %834 = vmatpush1.bf16.msra.mxu0 0
      %835 = vmatprep.mubr.bf16.mxu0 0
      %836 = vmatmul.mubr.bf16.gmra.mrb[0].mxu0 %v786
      %v837 = vpop.f32.mrb[0].mxu0
      %v838 = vadd.f32 0.0, %v837
      %v839 = vpop.f32.mrb[0].mxu0
      %v840 = vpop.f32.mrb[0].mxu0
      %v841 = vadd.f32 0.0, %v840
      %v842 = vpop.f32.mrb[0].mxu0
      %843 = vmatprep.mubr.bf16.mxu0 0
      %844 = vmatmul.mubr.bf16.gmra.mrb[0].mxu0 %v789
      %v845 = vpop.f32.mrb[0].mxu0
      %v846 = vadd.f32 0.0, %v845
      %v847 = vpop.f32.mrb[0].mxu0
      %v848 = vpop.f32.mrb[0].mxu0
      %v849 = vadd.f32 0.0, %v848
      %v850 = vpop.f32.mrb[0].mxu0
      %851 = vmatprep.mubr.bf16.mxu0 0
      %852 = vmatmul.mubr.bf16.gmra.mrb[0].mxu0 %v792
      %v853 = vpop.f32.mrb[0].mxu0
      %v854 = vadd.f32 0.0, %v853
      %v855 = vpop.f32.mrb[0].mxu0
      %v856 = vpop.f32.mrb[0].mxu0
      %v857 = vadd.f32 0.0, %v856
      %v858 = vpop.f32.mrb[0].mxu0
      %859 = vmatprep.mubr.bf16.mxu0 0
      %860 = vmatmul.mubr.bf16.gmra.mrb[0].mxu0 %v795
      %v861 = vpop.f32.mrb[0].mxu0
      %v862 = vadd.f32 0.0, %v861
      %v863 = vpop.f32.mrb[0].mxu0
      %v864 = vpop.f32.mrb[0].mxu0
      %v865 = vadd.f32 0.0, %v864
      %v866 = vpop.f32.mrb[0].mxu0
      %867 = vmatprep.mubr.bf16.mxu0 0
      %868 = vmatmul.mubr.bf16.gmra.mrb[0].mxu0 %v798
      %v869 = vpop.f32.mrb[0].mxu0
      %v870 = vadd.f32 0.0, %v869
      %v871 = vpop.f32.mrb[0].mxu0
      %v872 = vpop.f32.mrb[0].mxu0
      %v873 = vpop.f32.mrb[0].mxu0
      %874 = vdwg.mxu0
      %v875 = vld [vmem:[#allocation2] sm:$0xff]
      %v876 = vld [vmem:[#allocation2 + $0x8] sm:$0xff]
      %v877 = vld [vmem:[#allocation2 + $0x10] sm:$0xff]
      %v878 = vld [vmem:[#allocation2 + $0x18] sm:$0xff]
      %v879 = vld [vmem:[#allocation2 + $0x20] sm:$0xff]
      %v880 = vld [vmem:[#allocation2 + $0x28] sm:$0xff]
      %v881 = vld [vmem:[#allocation2 + $0x30] sm:$0xff]
      %v882 = vld [vmem:[#allocation2 + $0x38] sm:$0xff]
      %v883 = vld [vmem:[#allocation2 + $0x40] sm:$0x7f]
      %v884 = vadd.f32 %v875, %v838
      %v885 = vadd.f32 %v876, %v841
      %v886 = vadd.f32 %v877, %v846
      %v887 = vadd.f32 %v878, %v849
      %v888 = vadd.f32 %v879, %v854
      %v889 = vadd.f32 %v880, %v857
      %v890 = vadd.f32 %v881, %v862
      %v891 = vadd.f32 %v882, %v865
      %v892 = vadd.f32 %v883, %v870
      %893 = vst [vmem:[#allocation2] sm:$0xff] %v884
      %894 = vst [vmem:[#allocation2 + $0x8] sm:$0xff] %v885
      %895 = vst [vmem:[#allocation2 + $0x10] sm:$0xff] %v886
      %896 = vst [vmem:[#allocation2 + $0x18] sm:$0xff] %v887
      %897 = vst [vmem:[#allocation2 + $0x20] sm:$0xff] %v888
      %898 = vst [vmem:[#allocation2 + $0x28] sm:$0xff] %v889
      %899 = vst [vmem:[#allocation2 + $0x30] sm:$0xff] %v890
      %900 = vst [vmem:[#allocation2 + $0x38] sm:$0xff] %v891
      %901 = vst [vmem:[#allocation2 + $0x40] sm:$0x7f] %v892
      %v902 = vld [vmem:[%s206 + $0x78] sm:$0xe]
      %v903 = vld [vmem:[%s206 + $0x7c] sm:$0xf]
      %v904 = vld [vmem:[%s206 + $0x80] sm:$0xf]
      %v905 = vld [vmem:[%s206 + $0x84] sm:$0xf]
      %v906 = vld [vmem:[%s206 + $0x88] sm:$0xf]
      %v907 = vld [vmem:[%s206 + $0x8c] sm:$0xf]
      %v908 = vld [vmem:[%s206 + $0x90] sm:$0xf]
      %v909 = vld [vmem:[%s206 + $0x94] sm:$0xf]
      %v910 = vld [vmem:[%s206 + $0x98] sm:$0xf]
      %v911 = vld [vmem:[%s206 + $0x9c] sm:$0x1]
      %s912 = scalar_lea.vmem %s210, 8
      %v913 = vld [vmem:[%s912] sm:$0x3]
      %v924 = vunpack.c.l.b16 %v902
      %v925 = vunpack.c.l.b16 %v903
      %v926 = vunpack.c.l.b16 %v904
      %v927 = vunpack.c.l.b16 %v905
      %v928 = vunpack.c.l.b16 %v906
      %v929 = vunpack.c.l.b16 %v907
      %v930 = vunpack.c.l.b16 %v908
      %v931 = vunpack.c.l.b16 %v909
      %v932 = vunpack.c.l.b16 %v910
      %v933 = vunpack.c.l.b16 %v911
      %v934 = vpack.c.b16 %v925, %v924
      %v935 = vpack.c.b16 %v927, %v926
      %v936 = vpack.c.b16 %v929, %v928
      %v937 = vpack.c.b16 %v931, %v930
      %v938 = vpack.c.b16 %v933, %v932
      %vm939 = vsmask.f32 6400
      %v941 = vshrl.u32 %v934, 16
      %v943 = vrot.slane %v941, 1
      %v944 = vshll.u32 %v934, 16
      %v946 = vrot.slane %v944, 2
      %v947 = vor.u32 %v943, %v946
      %v949 = vshrl.u32 %v935, 16
      %v951 = vrot.slane %v949, 1
      %v952 = vshll.u32 %v935, 16
      %v954 = vrot.slane %v952, 2
      %v955 = vor.u32 %v951, %v954
      %v956 = vsel %vm939, %v947, %v955
      %v958 = vshrl.u32 %v936, 16
      %v960 = vrot.slane %v958, 1
      %v961 = vshll.u32 %v936, 16
      %v963 = vrot.slane %v961, 2
      %v964 = vor.u32 %v960, %v963
      %v965 = vsel %vm939, %v955, %v964
      %v967 = vshrl.u32 %v937, 16
      %v969 = vrot.slane %v967, 1
      %v970 = vshll.u32 %v937, 16
      %v972 = vrot.slane %v970, 2
      %v973 = vor.u32 %v969, %v972
      %v974 = vsel %vm939, %v964, %v973
      %v976 = vshrl.u32 %v938, 16
      %v978 = vrot.slane %v976, 1
      %v979 = vshll.u32 %v938, 16
      %v981 = vrot.slane %v979, 2
      %v982 = vor.u32 %v978, %v981
      %v983 = vsel %vm939, %v973, %v982
      %v985 = vsel %vm256, %v956, 0
      %v988 = vsel %vm256, %v965, 0
      %v991 = vsel %vm256, %v974, 0
      %v994 = vsel %vm256, %v983, 0
      %v997 = vsel %vm256, %v982, 0
      %v1000 = vsel %vm272, %v913, 0
      %1002 = vmatprep.subr.bf16.mxu0 0
      %1003 = vmatpush1.bf16.msra.mxu0 %v1000
      %1004 = vmatprep.subr.bf16.mxu0 0
      %1005 = vmatpush1.bf16.msra.mxu0 0
      %1006 = vmatprep.subr.bf16.mxu0 0
      %1007 = vmatpush1.bf16.msra.mxu0 0
      %1008 = vmatprep.subr.bf16.mxu0 0
      %1009 = vmatpush1.bf16.msra.mxu0 0
      %1010 = vmatprep.subr.bf16.mxu0 0
      %1011 = vmatpush1.bf16.msra.mxu0 0
      %1012 = vmatprep.subr.bf16.mxu0 0
      %1013 = vmatpush1.bf16.msra.mxu0 0
      %1014 = vmatprep.subr.bf16.mxu0 0
      %1015 = vmatpush1.bf16.msra.mxu0 0
      %1016 = vmatprep.subr.bf16.mxu0 0
      %1017 = vmatpush1.bf16.msra.mxu0 0
      %1018 = vmatprep.subr.bf16.mxu0 0
      %1019 = vmatpush1.bf16.msra.mxu0 0
      %1020 = vmatprep.subr.bf16.mxu0 0
      %1021 = vmatpush1.bf16.msra.mxu0 0
      %1022 = vmatprep.subr.bf16.mxu0 0
      %1023 = vmatpush1.bf16.msra.mxu0 0
      %1024 = vmatprep.subr.bf16.mxu0 0
      %1025 = vmatpush1.bf16.msra.mxu0 0
      %1026 = vmatprep.subr.bf16.mxu0 0
      %1027 = vmatpush1.bf16.msra.mxu0 0
      %1028 = vmatprep.subr.bf16.mxu0 0
      %1029 = vmatpush1.bf16.msra.mxu0 0
      %1030 = vmatprep.subr.bf16.mxu0 0
      %1031 = vmatpush1.bf16.msra.mxu0 0
      %1032 = vmatprep.subr.bf16.mxu0 0
      %1033 = vmatpush1.bf16.msra.mxu0 0
      %1034 = vmatprep.mubr.bf16.mxu0 0
      %1035 = vmatmul.mubr.bf16.gmra.mrb[0].mxu0 %v985
      %v1036 = vpop.f32.mrb[0].mxu0
      %v1037 = vadd.f32 0.0, %v1036
      %v1038 = vpop.f32.mrb[0].mxu0
      %v1039 = vpop.f32.mrb[0].mxu0
      %v1040 = vadd.f32 0.0, %v1039
      %v1041 = vpop.f32.mrb[0].mxu0
      %1042 = vmatprep.mubr.bf16.mxu0 0
      %1043 = vmatmul.mubr.bf16.gmra.mrb[0].mxu0 %v988
      %v1044 = vpop.f32.mrb[0].mxu0
      %v1045 = vadd.f32 0.0, %v1044
      %v1046 = vpop.f32.mrb[0].mxu0
      %v1047 = vpop.f32.mrb[0].mxu0
      %v1048 = vadd.f32 0.0, %v1047
      %v1049 = vpop.f32.mrb[0].mxu0
      %1050 = vmatprep.mubr.bf16.mxu0 0
      %1051 = vmatmul.mubr.bf16.gmra.mrb[0].mxu0 %v991
      %v1052 = vpop.f32.mrb[0].mxu0
      %v1053 = vadd.f32 0.0, %v1052
      %v1054 = vpop.f32.mrb[0].mxu0
      %v1055 = vpop.f32.mrb[0].mxu0
      %v1056 = vadd.f32 0.0, %v1055
      %v1057 = vpop.f32.mrb[0].mxu0
      %1058 = vmatprep.mubr.bf16.mxu0 0
      %1059 = vmatmul.mubr.bf16.gmra.mrb[0].mxu0 %v994
      %v1060 = vpop.f32.mrb[0].mxu0
      %v1061 = vadd.f32 0.0, %v1060
      %v1062 = vpop.f32.mrb[0].mxu0
      %v1063 = vpop.f32.mrb[0].mxu0
      %v1064 = vadd.f32 0.0, %v1063
      %v1065 = vpop.f32.mrb[0].mxu0
      %1066 = vmatprep.mubr.bf16.mxu0 0
      %1067 = vmatmul.mubr.bf16.gmra.mrb[0].mxu0 %v997
      %v1068 = vpop.f32.mrb[0].mxu0
      %v1069 = vadd.f32 0.0, %v1068
      %v1070 = vpop.f32.mrb[0].mxu0
      %v1071 = vpop.f32.mrb[0].mxu0
      %v1072 = vpop.f32.mrb[0].mxu0
      %1073 = vdwg.mxu0
      %v1074 = vld [vmem:[#allocation2] sm:$0xff]
      %v1075 = vld [vmem:[#allocation2 + $0x8] sm:$0xff]
      %v1076 = vld [vmem:[#allocation2 + $0x10] sm:$0xff]
      %v1077 = vld [vmem:[#allocation2 + $0x18] sm:$0xff]
      %v1078 = vld [vmem:[#allocation2 + $0x20] sm:$0xff]
      %v1079 = vld [vmem:[#allocation2 + $0x28] sm:$0xff]
      %v1080 = vld [vmem:[#allocation2 + $0x30] sm:$0xff]
      %v1081 = vld [vmem:[#allocation2 + $0x38] sm:$0xff]
      %v1082 = vld [vmem:[#allocation2 + $0x40] sm:$0x7f]
      %v1083 = vadd.f32 %v1074, %v1037
      %v1084 = vadd.f32 %v1075, %v1040
      %v1085 = vadd.f32 %v1076, %v1045
      %v1086 = vadd.f32 %v1077, %v1048
      %v1087 = vadd.f32 %v1078, %v1053
      %v1088 = vadd.f32 %v1079, %v1056
      %v1089 = vadd.f32 %v1080, %v1061
      %v1090 = vadd.f32 %v1081, %v1064
      %v1091 = vadd.f32 %v1082, %v1069
      %1092 = vst [vmem:[#allocation2] sm:$0xff] %v1083
      %1093 = vst [vmem:[#allocation2 + $0x8] sm:$0xff] %v1084
      %1094 = vst [vmem:[#allocation2 + $0x10] sm:$0xff] %v1085
      %1095 = vst [vmem:[#allocation2 + $0x18] sm:$0xff] %v1086
      %1096 = vst [vmem:[#allocation2 + $0x20] sm:$0xff] %v1087
      %1097 = vst [vmem:[#allocation2 + $0x28] sm:$0xff] %v1088
      %1098 = vst [vmem:[#allocation2 + $0x30] sm:$0xff] %v1089
      %1099 = vst [vmem:[#allocation2 + $0x38] sm:$0xff] %v1090
      %1100 = vst [vmem:[#allocation2 + $0x40] sm:$0x7f] %v1091
      %v1101 = vld [vmem:[%s206 + $0x50] sm:$0xe]
      %v1102 = vld [vmem:[%s206 + $0x54] sm:$0xf]
      %v1103 = vld [vmem:[%s206 + $0x58] sm:$0xf]
      %v1104 = vld [vmem:[%s206 + $0x5c] sm:$0xf]
      %v1105 = vld [vmem:[%s206 + $0x60] sm:$0xf]
      %v1106 = vld [vmem:[%s206 + $0x64] sm:$0xf]
      %v1107 = vld [vmem:[%s206 + $0x68] sm:$0xf]
      %v1108 = vld [vmem:[%s206 + $0x6c] sm:$0xf]
      %v1109 = vld [vmem:[%s206 + $0x70] sm:$0xf]
      %v1110 = vld [vmem:[%s206 + $0x74] sm:$0x1]
      %s1111 = scalar_lea.vmem %s210, 10
      %v1112 = vld [vmem:[%s1111] sm:$0x3]
      %v1123 = vunpack.c.l.b16 %v1101
      %v1124 = vunpack.c.l.b16 %v1102
      %v1125 = vunpack.c.l.b16 %v1103
      %v1126 = vunpack.c.l.b16 %v1104
      %v1127 = vunpack.c.l.b16 %v1105
      %v1128 = vunpack.c.l.b16 %v1106
      %v1129 = vunpack.c.l.b16 %v1107
      %v1130 = vunpack.c.l.b16 %v1108
      %v1131 = vunpack.c.l.b16 %v1109
      %v1132 = vunpack.c.l.b16 %v1110
      %v1133 = vpack.c.b16 %v1124, %v1123
      %v1134 = vpack.c.b16 %v1126, %v1125
      %v1135 = vpack.c.b16 %v1128, %v1127
      %v1136 = vpack.c.b16 %v1130, %v1129
      %v1137 = vpack.c.b16 %v1132, %v1131
      %v1139 = vshrl.u32 %v1133, 16
      %v1141 = vrot.slane %v1139, 1
      %v1142 = vshll.u32 %v1133, 16
      %v1144 = vrot.slane %v1142, 2
      %v1145 = vor.u32 %v1141, %v1144
      %v1147 = vshrl.u32 %v1134, 16
      %v1149 = vrot.slane %v1147, 1
      %v1150 = vshll.u32 %v1134, 16
      %v1152 = vrot.slane %v1150, 2
      %v1153 = vor.u32 %v1149, %v1152
      %v1154 = vsel %vm939, %v1145, %v1153
      %v1156 = vshrl.u32 %v1135, 16
      %v1158 = vrot.slane %v1156, 1
      %v1159 = vshll.u32 %v1135, 16
      %v1161 = vrot.slane %v1159, 2
      %v1162 = vor.u32 %v1158, %v1161
      %v1163 = vsel %vm939, %v1153, %v1162
      %v1165 = vshrl.u32 %v1136, 16
      %v1167 = vrot.slane %v1165, 1
      %v1168 = vshll.u32 %v1136, 16
      %v1170 = vrot.slane %v1168, 2
      %v1171 = vor.u32 %v1167, %v1170
      %v1172 = vsel %vm939, %v1162, %v1171
      %v1174 = vshrl.u32 %v1137, 16
      %v1176 = vrot.slane %v1174, 1
      %v1177 = vshll.u32 %v1137, 16
      %v1179 = vrot.slane %v1177, 2
      %v1180 = vor.u32 %v1176, %v1179
      %v1181 = vsel %vm939, %v1171, %v1180
      %v1183 = vsel %vm256, %v1154, 0
      %v1186 = vsel %vm256, %v1163, 0
      %v1189 = vsel %vm256, %v1172, 0
      %v1192 = vsel %vm256, %v1181, 0
      %v1195 = vsel %vm256, %v1180, 0
      %v1198 = vsel %vm272, %v1112, 0
      %1200 = vmatprep.subr.bf16.mxu0 0
      %1201 = vmatpush1.bf16.msra.mxu0 %v1198
      %1202 = vmatprep.subr.bf16.mxu0 0
      %1203 = vmatpush1.bf16.msra.mxu0 0
      %1204 = vmatprep.subr.bf16.mxu0 0
      %1205 = vmatpush1.bf16.msra.mxu0 0
      %1206 = vmatprep.subr.bf16.mxu0 0
      %1207 = vmatpush1.bf16.msra.mxu0 0
      %1208 = vmatprep.subr.bf16.mxu0 0
      %1209 = vmatpush1.bf16.msra.mxu0 0
      %1210 = vmatprep.subr.bf16.mxu0 0
      %1211 = vmatpush1.bf16.msra.mxu0 0
      %1212 = vmatprep.subr.bf16.mxu0 0
      %1213 = vmatpush1.bf16.msra.mxu0 0
      %1214 = vmatprep.subr.bf16.mxu0 0
      %1215 = vmatpush1.bf16.msra.mxu0 0
      %1216 = vmatprep.subr.bf16.mxu0 0
      %1217 = vmatpush1.bf16.msra.mxu0 0
      %1218 = vmatprep.subr.bf16.mxu0 0
      %1219 = vmatpush1.bf16.msra.mxu0 0
      %1220 = vmatprep.subr.bf16.mxu0 0
      %1221 = vmatpush1.bf16.msra.mxu0 0
      %1222 = vmatprep.subr.bf16.mxu0 0
      %1223 = vmatpush1.bf16.msra.mxu0 0
      %1224 = vmatprep.subr.bf16.mxu0 0
      %1225 = vmatpush1.bf16.msra.mxu0 0
      %1226 = vmatprep.subr.bf16.mxu0 0
      %1227 = vmatpush1.bf16.msra.mxu0 0
      %1228 = vmatprep.subr.bf16.mxu0 0
      %1229 = vmatpush1.bf16.msra.mxu0 0
      %1230 = vmatprep.subr.bf16.mxu0 0
      %1231 = vmatpush1.bf16.msra.mxu0 0
      %1232 = vmatprep.mubr.bf16.mxu0 0
      %1233 = vmatmul.mubr.bf16.gmra.mrb[0].mxu0 %v1183
      %v1234 = vpop.f32.mrb[0].mxu0
      %v1235 = vadd.f32 0.0, %v1234
      %v1236 = vpop.f32.mrb[0].mxu0
      %v1237 = vpop.f32.mrb[0].mxu0
      %v1238 = vadd.f32 0.0, %v1237
      %v1239 = vpop.f32.mrb[0].mxu0
      %1240 = vmatprep.mubr.bf16.mxu0 0
      %1241 = vmatmul.mubr.bf16.gmra.mrb[0].mxu0 %v1186
      %v1242 = vpop.f32.mrb[0].mxu0
      %v1243 = vadd.f32 0.0, %v1242
      %v1244 = vpop.f32.mrb[0].mxu0
      %v1245 = vpop.f32.mrb[0].mxu0
      %v1246 = vadd.f32 0.0, %v1245
      %v1247 = vpop.f32.mrb[0].mxu0
      %1248 = vmatprep.mubr.bf16.mxu0 0
      %1249 = vmatmul.mubr.bf16.gmra.mrb[0].mxu0 %v1189
      %v1250 = vpop.f32.mrb[0].mxu0
      %v1251 = vadd.f32 0.0, %v1250
      %v1252 = vpop.f32.mrb[0].mxu0
      %v1253 = vpop.f32.mrb[0].mxu0
      %v1254 = vadd.f32 0.0, %v1253
      %v1255 = vpop.f32.mrb[0].mxu0
      %1256 = vmatprep.mubr.bf16.mxu0 0
      %1257 = vmatmul.mubr.bf16.gmra.mrb[0].mxu0 %v1192
      %v1258 = vpop.f32.mrb[0].mxu0
      %v1259 = vadd.f32 0.0, %v1258
      %v1260 = vpop.f32.mrb[0].mxu0
      %v1261 = vpop.f32.mrb[0].mxu0
      %v1262 = vadd.f32 0.0, %v1261
      %v1263 = vpop.f32.mrb[0].mxu0
      %1264 = vmatprep.mubr.bf16.mxu0 0
      %1265 = vmatmul.mubr.bf16.gmra.mrb[0].mxu0 %v1195
      %v1266 = vpop.f32.mrb[0].mxu0
      %v1267 = vadd.f32 0.0, %v1266
      %v1268 = vpop.f32.mrb[0].mxu0
      %v1269 = vpop.f32.mrb[0].mxu0
      %v1270 = vpop.f32.mrb[0].mxu0
      %1271 = vdwg.mxu0
      %v1272 = vld [vmem:[#allocation2] sm:$0xff]
      %v1273 = vld [vmem:[#allocation2 + $0x8] sm:$0xff]
      %v1274 = vld [vmem:[#allocation2 + $0x10] sm:$0xff]
      %v1275 = vld [vmem:[#allocation2 + $0x18] sm:$0xff]
      %v1276 = vld [vmem:[#allocation2 + $0x20] sm:$0xff]
      %v1277 = vld [vmem:[#allocation2 + $0x28] sm:$0xff]
      %v1278 = vld [vmem:[#allocation2 + $0x30] sm:$0xff]
      %v1279 = vld [vmem:[#allocation2 + $0x38] sm:$0xff]
      %v1280 = vld [vmem:[#allocation2 + $0x40] sm:$0x7f]
      %v1281 = vadd.f32 %v1272, %v1235
      %v1282 = vadd.f32 %v1273, %v1238
      %v1283 = vadd.f32 %v1274, %v1243
      %v1284 = vadd.f32 %v1275, %v1246
      %v1285 = vadd.f32 %v1276, %v1251
      %v1286 = vadd.f32 %v1277, %v1254
      %v1287 = vadd.f32 %v1278, %v1259
      %v1288 = vadd.f32 %v1279, %v1262
      %v1289 = vadd.f32 %v1280, %v1267
      %1290 = vst [vmem:[#allocation2] sm:$0xff] %v1281
      %1291 = vst [vmem:[#allocation2 + $0x8] sm:$0xff] %v1282
      %1292 = vst [vmem:[#allocation2 + $0x10] sm:$0xff] %v1283
      %1293 = vst [vmem:[#allocation2 + $0x18] sm:$0xff] %v1284
      %1294 = vst [vmem:[#allocation2 + $0x20] sm:$0xff] %v1285
      %1295 = vst [vmem:[#allocation2 + $0x28] sm:$0xff] %v1286
      %1296 = vst [vmem:[#allocation2 + $0x30] sm:$0xff] %v1287
      %1297 = vst [vmem:[#allocation2 + $0x38] sm:$0xff] %v1288
      %1298 = vst [vmem:[#allocation2 + $0x40] sm:$0x7f] %v1289
      %v1299 = vld [vmem:[%s206 + $0x4] sm:$0xf]
      %v1300 = vld [vmem:[%s206 + $0x8] sm:$0xf]
      %v1301 = vld [vmem:[%s206 + $0xc] sm:$0xf]
      %v1302 = vld [vmem:[%s206 + $0x10] sm:$0xf]
      %v1303 = vld [vmem:[%s206 + $0x14] sm:$0xf]
      %v1304 = vld [vmem:[%s206 + $0x18] sm:$0xf]
      %v1305 = vld [vmem:[%s206 + $0x1c] sm:$0xf]
      %v1306 = vld [vmem:[%s206 + $0x20] sm:$0xf]
      %v1307 = vld [vmem:[%s206 + $0x24] sm:$0xf]
      %s1308 = scalar_lea.vmem %s210, 12
      %v1309 = vld [vmem:[%s1308] sm:$0x3]
      %v1319 = vunpack.c.l.b16 %v1299
      %v1320 = vunpack.c.l.b16 %v1300
      %v1321 = vunpack.c.l.b16 %v1301
      %v1322 = vunpack.c.l.b16 %v1302
      %v1323 = vunpack.c.l.b16 %v1303
      %v1324 = vunpack.c.l.b16 %v1304
      %v1325 = vunpack.c.l.b16 %v1305
      %v1326 = vunpack.c.l.b16 %v1306
      %v1327 = vunpack.c.l.b16 %v1307
      %v1328 = vpack.c.b16 %v1320, %v1319
      %v1329 = vpack.c.b16 %v1322, %v1321
      %v1330 = vpack.c.b16 %v1324, %v1323
      %v1331 = vpack.c.b16 %v1326, %v1325
      %v1332 = vpack.c.b16 %v1327, %v1327
      %v1334 = vshrl.u32 %v1328, 16
      %v1336 = vshll.u32 %v1328, 16
      %v1338 = vrot.slane %v1336, 1
      %v1339 = vor.u32 %v1334, %v1338
      %v1341 = vshll.u32 %v1329, 16
      %v1343 = vrot.slane %v1341, 1
      %v1344 = vsel %vm391, %v1339, %v1343
      %v1345 = vshrl.u32 %v1329, 16
      %v1347 = vor.u32 %v1345, %v1343
      %v1349 = vshll.u32 %v1330, 16
      %v1351 = vrot.slane %v1349, 1
      %v1352 = vsel %vm391, %v1347, %v1351
      %v1353 = vshrl.u32 %v1330, 16
      %v1355 = vor.u32 %v1353, %v1351
      %v1357 = vshll.u32 %v1331, 16
      %v1359 = vrot.slane %v1357, 1
      %v1360 = vsel %vm391, %v1355, %v1359
      %v1361 = vshrl.u32 %v1331, 16
      %v1363 = vor.u32 %v1361, %v1359
      %v1365 = vshll.u32 %v1332, 16
      %v1367 = vrot.slane %v1365, 1
      %v1368 = vsel %vm391, %v1363, %v1367
      %v1369 = vshrl.u32 %v1332, 16
      %v1371 = vor.u32 %v1369, %v1367
      %v1373 = vsel %vm256, %v1344, 0
      %v1376 = vsel %vm256, %v1352, 0
      %v1379 = vsel %vm256, %v1360, 0
      %v1382 = vsel %vm256, %v1368, 0
      %v1385 = vsel %vm256, %v1371, 0
      %v1388 = vsel %vm272, %v1309, 0
      %1390 = vmatprep.subr.bf16.mxu0 0
      %1391 = vmatpush1.bf16.msra.mxu0 %v1388
      %1392 = vmatprep.subr.bf16.mxu0 0
      %1393 = vmatpush1.bf16.msra.mxu0 0
      %1394 = vmatprep.subr.bf16.mxu0 0
      %1395 = vmatpush1.bf16.msra.mxu0 0
      %1396 = vmatprep.subr.bf16.mxu0 0
      %1397 = vmatpush1.bf16.msra.mxu0 0
      %1398 = vmatprep.subr.bf16.mxu0 0
      %1399 = vmatpush1.bf16.msra.mxu0 0
      %1400 = vmatprep.subr.bf16.mxu0 0
      %1401 = vmatpush1.bf16.msra.mxu0 0
      %1402 = vmatprep.subr.bf16.mxu0 0
      %1403 = vmatpush1.bf16.msra.mxu0 0
      %1404 = vmatprep.subr.bf16.mxu0 0
      %1405 = vmatpush1.bf16.msra.mxu0 0
      %1406 = vmatprep.subr.bf16.mxu0 0
      %1407 = vmatpush1.bf16.msra.mxu0 0
      %1408 = vmatprep.subr.bf16.mxu0 0
      %1409 = vmatpush1.bf16.msra.mxu0 0
      %1410 = vmatprep.subr.bf16.mxu0 0
      %1411 = vmatpush1.bf16.msra.mxu0 0
      %1412 = vmatprep.subr.bf16.mxu0 0
      %1413 = vmatpush1.bf16.msra.mxu0 0
      %1414 = vmatprep.subr.bf16.mxu0 0
      %1415 = vmatpush1.bf16.msra.mxu0 0
      %1416 = vmatprep.subr.bf16.mxu0 0
      %1417 = vmatpush1.bf16.msra.mxu0 0
      %1418 = vmatprep.subr.bf16.mxu0 0
      %1419 = vmatpush1.bf16.msra.mxu0 0
      %1420 = vmatprep.subr.bf16.mxu0 0
      %1421 = vmatpush1.bf16.msra.mxu0 0
      %1422 = vmatprep.mubr.bf16.mxu0 0
      %1423 = vmatmul.mubr.bf16.gmra.mrb[0].mxu0 %v1373
      %v1424 = vpop.f32.mrb[0].mxu0
      %v1425 = vadd.f32 0.0, %v1424
      %v1426 = vpop.f32.mrb[0].mxu0
      %v1427 = vpop.f32.mrb[0].mxu0
      %v1428 = vadd.f32 0.0, %v1427
      %v1429 = vpop.f32.mrb[0].mxu0
      %1430 = vmatprep.mubr.bf16.mxu0 0
      %1431 = vmatmul.mubr.bf16.gmra.mrb[0].mxu0 %v1376
      %v1432 = vpop.f32.mrb[0].mxu0
      %v1433 = vadd.f32 0.0, %v1432
      %v1434 = vpop.f32.mrb[0].mxu0
      %v1435 = vpop.f32.mrb[0].mxu0
      %v1436 = vadd.f32 0.0, %v1435
      %v1437 = vpop.f32.mrb[0].mxu0
      %1438 = vmatprep.mubr.bf16.mxu0 0
      %1439 = vmatmul.mubr.bf16.gmra.mrb[0].mxu0 %v1379
      %v1440 = vpop.f32.mrb[0].mxu0
      %v1441 = vadd.f32 0.0, %v1440
      %v1442 = vpop.f32.mrb[0].mxu0
      %v1443 = vpop.f32.mrb[0].mxu0
      %v1444 = vadd.f32 0.0, %v1443
      %v1445 = vpop.f32.mrb[0].mxu0
      %1446 = vmatprep.mubr.bf16.mxu0 0
      %1447 = vmatmul.mubr.bf16.gmra.mrb[0].mxu0 %v1382
      %v1448 = vpop.f32.mrb[0].mxu0
      %v1449 = vadd.f32 0.0, %v1448
      %v1450 = vpop.f32.mrb[0].mxu0
      %v1451 = vpop.f32.mrb[0].mxu0
      %v1452 = vadd.f32 0.0, %v1451
      %v1453 = vpop.f32.mrb[0].mxu0
      %1454 = vmatprep.mubr.bf16.mxu0 0
      %1455 = vmatmul.mubr.bf16.gmra.mrb[0].mxu0 %v1385
      %v1456 = vpop.f32.mrb[0].mxu0
      %v1457 = vadd.f32 0.0, %v1456
      %v1458 = vpop.f32.mrb[0].mxu0
      %v1459 = vpop.f32.mrb[0].mxu0
      %v1460 = vpop.f32.mrb[0].mxu0
      %1461 = vdwg.mxu0
      %v1462 = vld [vmem:[#allocation2] sm:$0xff]
      %v1463 = vld [vmem:[#allocation2 + $0x8] sm:$0xff]
      %v1464 = vld [vmem:[#allocation2 + $0x10] sm:$0xff]
      %v1465 = vld [vmem:[#allocation2 + $0x18] sm:$0xff]
      %v1466 = vld [vmem:[#allocation2 + $0x20] sm:$0xff]
      %v1467 = vld [vmem:[#allocation2 + $0x28] sm:$0xff]
      %v1468 = vld [vmem:[#allocation2 + $0x30] sm:$0xff]
      %v1469 = vld [vmem:[#allocation2 + $0x38] sm:$0xff]
      %v1470 = vld [vmem:[#allocation2 + $0x40] sm:$0x7f]
      %v1471 = vadd.f32 %v1462, %v1425
      %v1472 = vadd.f32 %v1463, %v1428
      %v1473 = vadd.f32 %v1464, %v1433
      %v1474 = vadd.f32 %v1465, %v1436
      %v1475 = vadd.f32 %v1466, %v1441
      %v1476 = vadd.f32 %v1467, %v1444
      %v1477 = vadd.f32 %v1468, %v1449
      %v1478 = vadd.f32 %v1469, %v1452
      %v1479 = vadd.f32 %v1470, %v1457
      %1480 = vst [vmem:[#allocation2] sm:$0xff] %v1471
      %1481 = vst [vmem:[#allocation2 + $0x8] sm:$0xff] %v1472
      %1482 = vst [vmem:[#allocation2 + $0x10] sm:$0xff] %v1473
      %1483 = vst [vmem:[#allocation2 + $0x18] sm:$0xff] %v1474
      %1484 = vst [vmem:[#allocation2 + $0x20] sm:$0xff] %v1475
      %1485 = vst [vmem:[#allocation2 + $0x28] sm:$0xff] %v1476
      %1486 = vst [vmem:[#allocation2 + $0x30] sm:$0xff] %v1477
      %1487 = vst [vmem:[#allocation2 + $0x38] sm:$0xff] %v1478
      %1488 = vst [vmem:[#allocation2 + $0x40] sm:$0x7f] %v1479
      %v1489 = vld [vmem:[%s206 + $0x2c] sm:$0xe]
      %v1490 = vld [vmem:[%s206 + $0x30] sm:$0xf]
      %v1491 = vld [vmem:[%s206 + $0x34] sm:$0xf]
      %v1492 = vld [vmem:[%s206 + $0x38] sm:$0xf]
      %v1493 = vld [vmem:[%s206 + $0x3c] sm:$0xf]
      %v1494 = vld [vmem:[%s206 + $0x40] sm:$0xf]
      %v1495 = vld [vmem:[%s206 + $0x44] sm:$0xf]
      %v1496 = vld [vmem:[%s206 + $0x48] sm:$0xf]
      %v1497 = vld [vmem:[%s206 + $0x4c] sm:$0xf]
      %v1498 = vld [vmem:[%s206 + $0x50] sm:$0x1]
      %s1499 = scalar_lea.vmem %s210, 14
      %v1500 = vld [vmem:[%s1499] sm:$0x3]
      %v1511 = vunpack.c.l.b16 %v1489
      %v1512 = vunpack.c.l.b16 %v1490
      %v1513 = vunpack.c.l.b16 %v1491
      %v1514 = vunpack.c.l.b16 %v1492
      %v1515 = vunpack.c.l.b16 %v1493
      %v1516 = vunpack.c.l.b16 %v1494
      %v1517 = vunpack.c.l.b16 %v1495
      %v1518 = vunpack.c.l.b16 %v1496
      %v1519 = vunpack.c.l.b16 %v1497
      %v1520 = vunpack.c.l.b16 %v1498
      %v1521 = vpack.c.b16 %v1512, %v1511
      %v1522 = vpack.c.b16 %v1514, %v1513
      %v1523 = vpack.c.b16 %v1516, %v1515
      %v1524 = vpack.c.b16 %v1518, %v1517
      %v1525 = vpack.c.b16 %v1520, %v1519
      %v1526 = vrot.slane %v1521, 1
      %v1527 = vrot.slane %v1522, 1
      %v1528 = vsel %vm775, %v1526, %v1527
      %v1529 = vrot.slane %v1523, 1
      %v1530 = vsel %vm775, %v1527, %v1529
      %v1531 = vrot.slane %v1524, 1
      %v1532 = vsel %vm775, %v1529, %v1531
      %v1533 = vrot.slane %v1525, 1
      %v1534 = vsel %vm775, %v1531, %v1533
      %v1536 = vsel %vm256, %v1528, 0
      %v1539 = vsel %vm256, %v1530, 0
      %v1542 = vsel %vm256, %v1532, 0
      %v1545 = vsel %vm256, %v1534, 0
      %v1548 = vsel %vm256, %v1533, 0
      %v1551 = vsel %vm272, %v1500, 0
      %1553 = vmatprep.subr.bf16.mxu0 0
      %1554 = vmatpush1.bf16.msra.mxu0 %v1551
      %1555 = vmatprep.subr.bf16.mxu0 0
      %1556 = vmatpush1.bf16.msra.mxu0 0
      %1557 = vmatprep.subr.bf16.mxu0 0
      %1558 = vmatpush1.bf16.msra.mxu0 0
      %1559 = vmatprep.subr.bf16.mxu0 0
      %1560 = vmatpush1.bf16.msra.mxu0 0
      %1561 = vmatprep.subr.bf16.mxu0 0
      %1562 = vmatpush1.bf16.msra.mxu0 0
      %1563 = vmatprep.subr.bf16.mxu0 0
      %1564 = vmatpush1.bf16.msra.mxu0 0
      %1565 = vmatprep.subr.bf16.mxu0 0
      %1566 = vmatpush1.bf16.msra.mxu0 0
      %1567 = vmatprep.subr.bf16.mxu0 0
      %1568 = vmatpush1.bf16.msra.mxu0 0
      %1569 = vmatprep.subr.bf16.mxu0 0
      %1570 = vmatpush1.bf16.msra.mxu0 0
      %1571 = vmatprep.subr.bf16.mxu0 0
      %1572 = vmatpush1.bf16.msra.mxu0 0
      %1573 = vmatprep.subr.bf16.mxu0 0
      %1574 = vmatpush1.bf16.msra.mxu0 0
      %1575 = vmatprep.subr.bf16.mxu0 0
      %1576 = vmatpush1.bf16.msra.mxu0 0
      %1577 = vmatprep.subr.bf16.mxu0 0
      %1578 = vmatpush1.bf16.msra.mxu0 0
      %1579 = vmatprep.subr.bf16.mxu0 0
      %1580 = vmatpush1.bf16.msra.mxu0 0
      %1581 = vmatprep.subr.bf16.mxu0 0
      %1582 = vmatpush1.bf16.msra.mxu0 0
      %1583 = vmatprep.subr.bf16.mxu0 0
      %1584 = vmatpush1.bf16.msra.mxu0 0
      %1585 = vmatprep.mubr.bf16.mxu0 0
      %1586 = vmatmul.mubr.bf16.gmra.mrb[0].mxu0 %v1536
      %v1587 = vpop.f32.mrb[0].mxu0
      %v1588 = vadd.f32 0.0, %v1587
      %v1589 = vpop.f32.mrb[0].mxu0
      %v1590 = vpop.f32.mrb[0].mxu0
      %v1591 = vadd.f32 0.0, %v1590
      %v1592 = vpop.f32.mrb[0].mxu0
      %1593 = vmatprep.mubr.bf16.mxu0 0
      %1594 = vmatmul.mubr.bf16.gmra.mrb[0].mxu0 %v1539
      %v1595 = vpop.f32.mrb[0].mxu0
      %v1596 = vadd.f32 0.0, %v1595
      %v1597 = vpop.f32.mrb[0].mxu0
      %v1598 = vpop.f32.mrb[0].mxu0
      %v1599 = vadd.f32 0.0, %v1598
      %v1600 = vpop.f32.mrb[0].mxu0
      %1601 = vmatprep.mubr.bf16.mxu0 0
      %1602 = vmatmul.mubr.bf16.gmra.mrb[0].mxu0 %v1542
      %v1603 = vpop.f32.mrb[0].mxu0
      %v1604 = vadd.f32 0.0, %v1603
      %v1605 = vpop.f32.mrb[0].mxu0
      %v1606 = vpop.f32.mrb[0].mxu0
      %v1607 = vadd.f32 0.0, %v1606
      %v1608 = vpop.f32.mrb[0].mxu0
      %1609 = vmatprep.mubr.bf16.mxu0 0
      %1610 = vmatmul.mubr.bf16.gmra.mrb[0].mxu0 %v1545
      %v1611 = vpop.f32.mrb[0].mxu0
      %v1612 = vadd.f32 0.0, %v1611
      %v1613 = vpop.f32.mrb[0].mxu0
      %v1614 = vpop.f32.mrb[0].mxu0
      %v1615 = vadd.f32 0.0, %v1614
      %v1616 = vpop.f32.mrb[0].mxu0
      %1617 = vmatprep.mubr.bf16.mxu0 0
      %1618 = vmatmul.mubr.bf16.gmra.mrb[0].mxu0 %v1548
      %v1619 = vpop.f32.mrb[0].mxu0
      %v1620 = vadd.f32 0.0, %v1619
      %v1621 = vpop.f32.mrb[0].mxu0
      %v1622 = vpop.f32.mrb[0].mxu0
      %v1623 = vpop.f32.mrb[0].mxu0
      %1624 = vdwg.mxu0
      %v1625 = vld [vmem:[#allocation2] sm:$0xff]
      %v1626 = vld [vmem:[#allocation2 + $0x8] sm:$0xff]
      %v1627 = vld [vmem:[#allocation2 + $0x10] sm:$0xff]
      %v1628 = vld [vmem:[#allocation2 + $0x18] sm:$0xff]
      %v1629 = vld [vmem:[#allocation2 + $0x20] sm:$0xff]
      %v1630 = vld [vmem:[#allocation2 + $0x28] sm:$0xff]
      %v1631 = vld [vmem:[#allocation2 + $0x30] sm:$0xff]
      %v1632 = vld [vmem:[#allocation2 + $0x38] sm:$0xff]
      %v1633 = vld [vmem:[#allocation2 + $0x40] sm:$0x7f]
      %v1634 = vadd.f32 %v1625, %v1588
      %v1635 = vadd.f32 %v1626, %v1591
      %v1636 = vadd.f32 %v1627, %v1596
      %v1637 = vadd.f32 %v1628, %v1599
      %v1638 = vadd.f32 %v1629, %v1604
      %v1639 = vadd.f32 %v1630, %v1607
      %v1640 = vadd.f32 %v1631, %v1612
      %v1641 = vadd.f32 %v1632, %v1615
      %v1642 = vadd.f32 %v1633, %v1620
      %1643 = vst [vmem:[#allocation2] sm:$0xff] %v1634
      %1644 = vst [vmem:[#allocation2 + $0x8] sm:$0xff] %v1635
      %1645 = vst [vmem:[#allocation2 + $0x10] sm:$0xff] %v1636
      %1646 = vst [vmem:[#allocation2 + $0x18] sm:$0xff] %v1637
      %1647 = vst [vmem:[#allocation2 + $0x20] sm:$0xff] %v1638
      %1648 = vst [vmem:[#allocation2 + $0x28] sm:$0xff] %v1639
      %1649 = vst [vmem:[#allocation2 + $0x30] sm:$0xff] %v1640
      %1650 = vst [vmem:[#allocation2 + $0x38] sm:$0xff] %v1641
      %1651 = vst [vmem:[#allocation2 + $0x40] sm:$0x7f] %v1642
      %v1652 = vld [vmem:[%s206 + $0x4] sm:$0xe]
      %v1653 = vld [vmem:[%s206 + $0x8] sm:$0xf]
      %v1654 = vld [vmem:[%s206 + $0xc] sm:$0xf]
      %v1655 = vld [vmem:[%s206 + $0x10] sm:$0xf]
      %v1656 = vld [vmem:[%s206 + $0x14] sm:$0xf]
      %v1657 = vld [vmem:[%s206 + $0x18] sm:$0xf]
      %v1658 = vld [vmem:[%s206 + $0x1c] sm:$0xf]
      %v1659 = vld [vmem:[%s206 + $0x20] sm:$0xf]
      %v1660 = vld [vmem:[%s206 + $0x24] sm:$0xf]
      %v1661 = vld [vmem:[%s206 + $0x28] sm:$0x1]
      %s1662 = scalar_lea.vmem %s210, 16
      %v1663 = vld [vmem:[%s1662] sm:$0x3]
      %v1674 = vunpack.c.l.b16 %v1652
      %v1675 = vunpack.c.l.b16 %v1653
      %v1676 = vunpack.c.l.b16 %v1654
      %v1677 = vunpack.c.l.b16 %v1655
      %v1678 = vunpack.c.l.b16 %v1656
      %v1679 = vunpack.c.l.b16 %v1657
      %v1680 = vunpack.c.l.b16 %v1658
      %v1681 = vunpack.c.l.b16 %v1659
      %v1682 = vunpack.c.l.b16 %v1660
      %v1683 = vunpack.c.l.b16 %v1661
      %v1684 = vpack.c.b16 %v1675, %v1674
      %v1685 = vpack.c.b16 %v1677, %v1676
      %v1686 = vpack.c.b16 %v1679, %v1678
      %v1687 = vpack.c.b16 %v1681, %v1680
      %v1688 = vpack.c.b16 %v1683, %v1682
      %v1689 = vrot.slane %v1684, 1
      %v1690 = vrot.slane %v1685, 1
      %v1691 = vsel %vm775, %v1689, %v1690
      %v1692 = vrot.slane %v1686, 1
      %v1693 = vsel %vm775, %v1690, %v1692
      %v1694 = vrot.slane %v1687, 1
      %v1695 = vsel %vm775, %v1692, %v1694
      %v1696 = vrot.slane %v1688, 1
      %v1697 = vsel %vm775, %v1694, %v1696
      %v1699 = vsel %vm256, %v1691, 0
      %v1702 = vsel %vm256, %v1693, 0
      %v1705 = vsel %vm256, %v1695, 0
      %v1708 = vsel %vm256, %v1697, 0
      %v1711 = vsel %vm256, %v1696, 0
      %v1714 = vsel %vm272, %v1663, 0
      %1716 = vmatprep.subr.bf16.mxu0 0
      %1717 = vmatpush1.bf16.msra.mxu0 %v1714
      %1718 = vmatprep.subr.bf16.mxu0 0
      %1719 = vmatpush1.bf16.msra.mxu0 0
      %1720 = vmatprep.subr.bf16.mxu0 0
      %1721 = vmatpush1.bf16.msra.mxu0 0
      %1722 = vmatprep.subr.bf16.mxu0 0
      %1723 = vmatpush1.bf16.msra.mxu0 0
      %1724 = vmatprep.subr.bf16.mxu0 0
      %1725 = vmatpush1.bf16.msra.mxu0 0
      %1726 = vmatprep.subr.bf16.mxu0 0
      %1727 = vmatpush1.bf16.msra.mxu0 0
      %1728 = vmatprep.subr.bf16.mxu0 0
      %1729 = vmatpush1.bf16.msra.mxu0 0
      %1730 = vmatprep.subr.bf16.mxu0 0
      %1731 = vmatpush1.bf16.msra.mxu0 0
      %1732 = vmatprep.subr.bf16.mxu0 0
      %1733 = vmatpush1.bf16.msra.mxu0 0
      %1734 = vmatprep.subr.bf16.mxu0 0
      %1735 = vmatpush1.bf16.msra.mxu0 0
      %1736 = vmatprep.subr.bf16.mxu0 0
      %1737 = vmatpush1.bf16.msra.mxu0 0
      %1738 = vmatprep.subr.bf16.mxu0 0
      %1739 = vmatpush1.bf16.msra.mxu0 0
      %1740 = vmatprep.subr.bf16.mxu0 0
      %1741 = vmatpush1.bf16.msra.mxu0 0
      %1742 = vmatprep.subr.bf16.mxu0 0
      %1743 = vmatpush1.bf16.msra.mxu0 0
      %1744 = vmatprep.subr.bf16.mxu0 0
      %1745 = vmatpush1.bf16.msra.mxu0 0
      %1746 = vmatprep.subr.bf16.mxu0 0
      %1747 = vmatpush1.bf16.msra.mxu0 0
      %1748 = vmatprep.mubr.bf16.mxu0 0
      %1749 = vmatmul.mubr.bf16.gmra.mrb[0].mxu0 %v1699
      %v1750 = vpop.f32.mrb[0].mxu0
      %v1751 = vadd.f32 0.0, %v1750
      %v1752 = vpop.f32.mrb[0].mxu0
      %v1753 = vpop.f32.mrb[0].mxu0
      %v1754 = vadd.f32 0.0, %v1753
      %v1755 = vpop.f32.mrb[0].mxu0
      %1756 = vmatprep.mubr.bf16.mxu0 0
      %1757 = vmatmul.mubr.bf16.gmra.mrb[0].mxu0 %v1702
      %v1758 = vpop.f32.mrb[0].mxu0
      %v1759 = vadd.f32 0.0, %v1758
      %v1760 = vpop.f32.mrb[0].mxu0
      %v1761 = vpop.f32.mrb[0].mxu0
      %v1762 = vadd.f32 0.0, %v1761
      %v1763 = vpop.f32.mrb[0].mxu0
      %1764 = vmatprep.mubr.bf16.mxu0 0
      %1765 = vmatmul.mubr.bf16.gmra.mrb[0].mxu0 %v1705
      %v1766 = vpop.f32.mrb[0].mxu0
      %v1767 = vadd.f32 0.0, %v1766
      %v1768 = vpop.f32.mrb[0].mxu0
      %v1769 = vpop.f32.mrb[0].mxu0
      %v1770 = vadd.f32 0.0, %v1769
      %v1771 = vpop.f32.mrb[0].mxu0
      %1772 = vmatprep.mubr.bf16.mxu0 0
      %1773 = vmatmul.mubr.bf16.gmra.mrb[0].mxu0 %v1708
      %v1774 = vpop.f32.mrb[0].mxu0
      %v1775 = vadd.f32 0.0, %v1774
      %v1776 = vpop.f32.mrb[0].mxu0
      %v1777 = vpop.f32.mrb[0].mxu0
      %v1778 = vadd.f32 0.0, %v1777
      %v1779 = vpop.f32.mrb[0].mxu0
      %1780 = vmatprep.mubr.bf16.mxu0 0
      %1781 = vmatmul.mubr.bf16.gmra.mrb[0].mxu0 %v1711
      %v1782 = vpop.f32.mrb[0].mxu0
      %v1783 = vadd.f32 0.0, %v1782
      %v1784 = vpop.f32.mrb[0].mxu0
      %v1785 = vpop.f32.mrb[0].mxu0
      %v1786 = vpop.f32.mrb[0].mxu0
      %1787 = vdwg.mxu0
      %v1788 = vld [vmem:[#allocation2] sm:$0xff]
      %v1789 = vld [vmem:[#allocation2 + $0x8] sm:$0xff]
      %v1790 = vld [vmem:[#allocation2 + $0x10] sm:$0xff]
      %v1791 = vld [vmem:[#allocation2 + $0x18] sm:$0xff]
      %v1792 = vld [vmem:[#allocation2 + $0x20] sm:$0xff]
      %v1793 = vld [vmem:[#allocation2 + $0x28] sm:$0xff]
      %v1794 = vld [vmem:[#allocation2 + $0x30] sm:$0xff]
      %v1795 = vld [vmem:[#allocation2 + $0x38] sm:$0xff]
      %v1796 = vld [vmem:[#allocation2 + $0x40] sm:$0x7f]
      %v1797 = vadd.f32 %v1788, %v1751
      %v1798 = vadd.f32 %v1789, %v1754
      %v1799 = vadd.f32 %v1790, %v1759
      %v1800 = vadd.f32 %v1791, %v1762
      %v1801 = vadd.f32 %v1792, %v1767
      %v1802 = vadd.f32 %v1793, %v1770
      %v1803 = vadd.f32 %v1794, %v1775
      %v1804 = vadd.f32 %v1795, %v1778
      %v1805 = vadd.f32 %v1796, %v1783
      %1806 = vst [vmem:[#allocation2] sm:$0xff] %v1797
      %1807 = vst [vmem:[#allocation2 + $0x8] sm:$0xff] %v1798
      %1808 = vst [vmem:[#allocation2 + $0x10] sm:$0xff] %v1799
      %1809 = vst [vmem:[#allocation2 + $0x18] sm:$0xff] %v1800
      %1810 = vst [vmem:[#allocation2 + $0x20] sm:$0xff] %v1801
      %1811 = vst [vmem:[#allocation2 + $0x28] sm:$0xff] %v1802
      %1812 = vst [vmem:[#allocation2 + $0x30] sm:$0xff] %v1803
      %1813 = vst [vmem:[#allocation2 + $0x38] sm:$0xff] %v1804
      %1814 = vst [vmem:[#allocation2 + $0x40] sm:$0x7f] %v1805
      %v1815 = vld [vmem:[#allocation2] sm:$0xff]
      %v1816 = vld [vmem:[#allocation2 + $0x8] sm:$0xff]
      %v1817 = vld [vmem:[#allocation2 + $0x10] sm:$0xff]
      %v1818 = vld [vmem:[#allocation2 + $0x18] sm:$0xff]
      %v1819 = vld [vmem:[#allocation2 + $0x20] sm:$0xff]
      %v1820 = vld [vmem:[#allocation2 + $0x28] sm:$0xff]
      %v1821 = vld [vmem:[#allocation2 + $0x30] sm:$0xff]
      %v1822 = vld [vmem:[#allocation2 + $0x38] sm:$0xff]
      %v1823 = vld [vmem:[#allocation2 + $0x40] sm:$0x7f]
      %v1824 = vld [vmem:[%s213] sm:$0x1]
      %v1826 = vlaneseq
      %v1827 = vshrl.u32 %v1826, 7
      %v1828 = vsub.s32 0, %v1827
      %v1829 = vrot.slane %v1824, %v1828
      %v1831 = vadd.f32 %v1815, %v1829
      %v1832 = vadd.f32 %v1816, %v1829
      %v1833 = vadd.f32 %v1817, %v1829
      %v1834 = vadd.f32 %v1818, %v1829
      %v1835 = vadd.f32 %v1819, %v1829
      %v1836 = vadd.f32 %v1820, %v1829
      %v1837 = vadd.f32 %v1821, %v1829
      %v1838 = vadd.f32 %v1822, %v1829
      %v1839 = vadd.f32 %v1823, %v1829
      %v1840 = vmax.f32 %v1831, 0.0
      %v1841 = vmax.f32 %v1832, 0.0
      %v1842 = vmax.f32 %v1833, 0.0
      %v1843 = vmax.f32 %v1834, 0.0
      %v1844 = vmax.f32 %v1835, 0.0
      %v1845 = vmax.f32 %v1836, 0.0
      %v1846 = vmax.f32 %v1837, 0.0
      %v1847 = vmax.f32 %v1838, 0.0
      %v1848 = vmax.f32 %v1839, 0.0
      %v1849 = vpack.c.bf16 %v1841, %v1840
      %v1850 = vpack.c.bf16 %v1843, %v1842
      %v1851 = vpack.c.bf16 %v1845, %v1844
      %v1852 = vpack.c.bf16 %v1847, %v1846
      %v1853 = vpack.c.bf16 %v1848, %v1848
      %v1859 = vunpack.c.l.b16 %v1849
      %v1860 = vunpack.c.h.b16 %v1849
      %v1861 = vunpack.c.l.b16 %v1850
      %v1862 = vunpack.c.h.b16 %v1850
      %v1863 = vunpack.c.l.b16 %v1851
      %v1864 = vunpack.c.h.b16 %v1851
      %v1865 = vunpack.c.l.b16 %v1852
      %v1866 = vunpack.c.h.b16 %v1852
      %v1867 = vunpack.c.l.b16 %v1853
      %v1868 = vpack.c.b16 %v1859, %v1859
      %v1869 = vpack.c.b16 %v1860, %v1860
      %v1870 = vpack.c.b16 %v1861, %v1861
      %v1871 = vpack.c.b16 %v1862, %v1862
      %v1872 = vpack.c.b16 %v1863, %v1863
      %v1873 = vpack.c.b16 %v1864, %v1864
      %v1874 = vpack.c.b16 %v1865, %v1865
      %v1875 = vpack.c.b16 %v1866, %v1866
      %v1876 = vpack.c.b16 %v1867, %v1867
      %1886 = vst [vmem:[%s221] sm:$0xf] %v1868
      %1887 = vst [vmem:[%s221 + $0x4] sm:$0xf] %v1869
      %1888 = vst [vmem:[%s221 + $0x8] sm:$0xf] %v1870
      %1889 = vst [vmem:[%s221 + $0xc] sm:$0xf] %v1871
      %1890 = vst [vmem:[%s221 + $0x10] sm:$0xf] %v1872
      %1891 = vst [vmem:[%s221 + $0x14] sm:$0xf] %v1873
      %1892 = vst [vmem:[%s221 + $0x18] sm:$0xf] %v1874
      %1893 = vst [vmem:[%s221 + $0x1c] sm:$0xf] %v1875
      %vm1894 = vcmask 1043456
      %vm1895 = vsmask.f32 3328
      %vm1896 = vmand %vm1894, %vm1895
      %v1897 = vld [vmem:[%s221 + $0x20] sm:$0xf]
      %v1898 = vsel %vm1896, %v1876, %v1897
      %1899 = vst [vmem:[%s221 + $0x20] sm:$0xf] %v1898
      %p1900 = scmp.lt.s32.totalorder %s19, 1
      %s1901 = scalar_select %p1900, %s19, 1
      %p1902 = scmp.lt.s32.totalorder %s18, 0
      %s1903 = scalar_select %p1902, %s18, 0
      %s1904 = smul.addr %s1901, 9
      %s1905 = sadd.s32 %s1903, %s1904
      %s1906 = smul.addr %s1905, 4
      %s1907 = scalar_lea.vmem %s3, %s1906
      // Predicated region
      $region33: #{tpu_custom_call.1} parent=31 // pred_check
        %p1908 = pneg %p124
      $region34: #{tpu_custom_call.1} parent=31 // pred_check_branch
        %1910 = sbr.rel (%p1908) target = $region36
      $region35: #{tpu_custom_call.1} parent=31 // pred_region
        _
      $region36: #{tpu_custom_call.1} parent=31 // pred_fallthru
        _
    $region32: #{tpu_custom_call.1} parent=5 // pred_fallthru
      _
    %p1911 = scmp.le.s32.totalorder 2, %s9
    // Predicated region
    $region37: #{tpu_custom_call.1} parent=5 // pred_check
      %p1912 = pneg %p1911
    $region38: #{tpu_custom_call.1} parent=5 // pred_check_branch
      %1914 = sbr.rel (%p1912) target = $region40
    $region39: #{tpu_custom_call.1} parent=5 // pred_region
      %s1915 = ssub.s32 %s9, 2
      // Predicated region
      $region41: #{tpu_custom_call.1} parent=39 // pred_check
        %p1916 = pneg %p130
      $region42: #{tpu_custom_call.1} parent=39 // pred_check_branch
        %1918 = sbr.rel (%p1916) target = $region44
      $region43: #{tpu_custom_call.1} parent=39 // pred_region
        %p1919 = scmp.lt.s32.totalorder %s21, 1
        %s1920 = scalar_select %p1919, %s21, 1
        %p1921 = scmp.lt.s32.totalorder %s20, 0
        %s1922 = scalar_select %p1921, %s20, 0
        %s1923 = smul.addr %s1920, 9
        %s1924 = sadd.s32 %s1922, %s1923
        %s1925 = smul.addr %s1924, 4
        %s1926 = scalar_lea.vmem %s3, %s1925
      $region44: #{tpu_custom_call.1} parent=39 // pred_fallthru
        _
    $region40: #{tpu_custom_call.1} parent=5 // pred_fallthru
      _
  $region6: #{tpu_custom_call.1} parent=0 // loop_footer
    %s13 = sadd.s32 1, %s9
  $region7: #{tpu_custom_call.1} parent=0 // loop_footer_branch
    %8 = sbr.rel target = $region3
  $region8: #{tpu_custom_call.1} parent=0 // loop_exit
    _

</llo_original>
